<compile_context>
chip_gen: v5e
topology: v5e:2x2
jax: 0.10.0
libtpu: 0.0.40
codegen_flags: <defaults>
</compile_context>

<pallas_src>
import functools

import jax
import jax.numpy as jnp
from jax.experimental import pallas as pl
from jax.experimental.pallas import tpu as pltpu

GEM_P = 3.0
GEM_EPS = 1e-6
BN_EPS = 1e-5

N_META = 9
OUT_NEURONS = 600
META_NEURONS = 150
FEAT_CH = 32          # stand-in for backbone._fc.in_features
HEAD_OUT = 2

# lane-dense padded sizes
K_RAW = 3 * 3 * 3     # 27 im2col taps
K_PAD = 32
C_PAD = 128           # conv output channels padded to a full lane width
META_IN_PAD = 16      # 9  -> 16 (contraction dim of meta layer 1)
OUT_PAD = 640         # 600 -> 5*128
META_PAD = 256        # 150 -> 2*128
HEAD_PAD = 128        # 2   -> 128


def _pad_to(x, shape):
    return jnp.pad(x, [(0, t - s) for s, t in zip(x.shape, shape)])


def _fold_bn(gamma, beta, mean, var):
    scale = gamma / jnp.sqrt(var + BN_EPS)
    shift = beta - mean * scale
    return scale, shift


def _choose_row_tiling(ohw):
    """Row-tile size (multiple of 8, <= 4096) and OHW padded to a tile
    multiple.  Big tiles amortize the ~0.35us/grid-step overhead; >=2 tiles
    whenever ohw > 8 keep the auto-pipeline's DMA/compute overlap alive
    (matters most on v7x megacore).  A (tile, K_PAD) bf16 block is tiny
    (<=256 KiB), nowhere near any VMEM limit."""
    half = (ohw + 1) // 2
    tile = min(4096, max(8, ((half + 7) // 8) * 8))
    padded = ((ohw + tile - 1) // tile) * tile
    return tile, padded


# ----------------- fused conv + BN + Swish + GeM + head ---------------------

def _effnet_kernel(p_ref, meta_ref, cw_ref, css_ref,
                   fcw_ref, m1w_ref, m2w_ref, owc_ref, owm_ref,
                   v600_ref, v150_ref, outb_ref,
                   o_ref, acc_ref, *, inv_hw, n_pad_rows):
    """Grid = (batch, row_tiles).  Per (b, r): patches @ W (bf16 MXU, f32
    acc), folded BN, Swish, accumulate sum(clamp(y,eps)^3).  On the last row
    tile: correct for zero-padded rows, finish GeM (mean + cube root) and run
    the whole post-pool head on the per-batch pooled vector."""
    r = pl.program_id(1)

    @pl.when(r == 0)
    def _():
        acc_ref[...] = jnp.zeros_like(acc_ref)

    css = css_ref[...]
    scale = css[0:1]                                  # (1, C_PAD)
    shift = css[1:2]

    y = jnp.dot(p_ref[0], cw_ref[...], preferred_element_type=jnp.float32)
    y = y * scale + shift                             # folded BatchNorm (eval)
    y = y * jax.nn.sigmoid(y)                         # Swish
    xc = jnp.maximum(y, GEM_EPS)                      # GeM clamp
    # NOTE: this reduce lowers to vreg-wise VALU adds plus a single
    # cross-sublane reduce per step (the (8,C_PAD) partial-sum variant would
    # only save that one XLU op, which co-issues with the MXU anyway).
    acc_ref[...] += jnp.sum(xc * xc * xc, axis=0, keepdims=True)

    @pl.when(r == pl.num_programs(1) - 1)
    def _():
        # Exact bias-correction for the zero-padded spatial rows: a zero
        # patch row produces y == shift, so its contribution is known.
        s0 = shift * jax.nn.sigmoid(shift)
        c0 = jnp.maximum(s0, GEM_EPS)
        zero_row = c0 * c0 * c0                       # (1, C_PAD)
        total = acc_ref[...] - n_pad_rows * zero_row
        m = total * inv_hw                            # spatial mean of x^p
        pooled = jnp.exp(jnp.log(m) * (1.0 / GEM_P))  # (1, C_PAD)

        # ---- fused post-pool head (eval: Dropout = identity) ----
        f32 = jnp.float32
        v600 = v600_ref[...]                          # fc_b, m1_b, m1_sc, m1_sh
        v150 = v150_ref[...]                          # m2_b, m2_sc, m2_sh
        # backbone._fc : Linear(in_features, 600)   (bf16 weights, f32 acc)
        cnn = jnp.dot(pooled, fcw_ref[...], preferred_element_type=f32) + v600[0:1]
        # meta_fc layer 1: Linear(9,600)+BN+ReLU
        mt = jnp.dot(meta_ref[0], m1w_ref[...], preferred_element_type=f32) + v600[1:2]
        mt = jnp.maximum(mt * v600[2:3] + v600[3:4], 0.0)
        # meta_fc layer 2: Linear(600,150)+BN+ReLU
        mt = jnp.dot(mt, m2w_ref[...], preferred_element_type=f32) + v150[0:1]
        mt = jnp.maximum(mt * v150[1:2] + v150[2:3], 0.0)
        # output Linear(750,2): concat replaced by split weights + summed dots
        out = (jnp.dot(cnn, owc_ref[...], preferred_element_type=f32)
               + jnp.dot(mt, owm_ref[...], preferred_element_type=f32)
               + outb_ref[...])
        o_ref[...] = out[None].astype(o_ref.dtype)


def pallas_effnet(patches, meta_p, hp, *, batch, ohw, ohw_pad, tile_r):
    r_tiles = ohw_pad // tile_r
    kernel = functools.partial(_effnet_kernel,
                               inv_hw=1.0 / float(ohw),
                               n_pad_rows=float(ohw_pad - ohw))
    out = pl.pallas_call(
        kernel,
        out_shape=jax.ShapeDtypeStruct((batch, 1, HEAD_PAD), jnp.float32),
        grid=(batch, r_tiles),
        in_specs=[
            pl.BlockSpec((1, tile_r, K_PAD), lambda b, r: (b, r, 0)),       # patches
            pl.BlockSpec((1, 1, META_IN_PAD), lambda b, r: (b, 0, 0)),      # meta
            pl.BlockSpec((K_PAD, C_PAD), lambda b, r: (0, 0)),              # conv_w
            pl.BlockSpec((2, C_PAD), lambda b, r: (0, 0)),                  # conv scale/shift
            pl.BlockSpec((C_PAD, OUT_PAD), lambda b, r: (0, 0)),            # fc_w
            pl.BlockSpec((META_IN_PAD, OUT_PAD), lambda b, r: (0, 0)),      # m1_w
            pl.BlockSpec((OUT_PAD, META_PAD), lambda b, r: (0, 0)),         # m2_w
            pl.BlockSpec((OUT_PAD, HEAD_PAD), lambda b, r: (0, 0)),         # ow_cnn
            pl.BlockSpec((META_PAD, HEAD_PAD), lambda b, r: (0, 0)),        # ow_meta
            pl.BlockSpec((4, OUT_PAD), lambda b, r: (0, 0)),                # vec600 slab
            pl.BlockSpec((3, META_PAD), lambda b, r: (0, 0)),               # vec150 slab
            pl.BlockSpec((1, HEAD_PAD), lambda b, r: (0, 0)),               # out_b
        ],
        out_specs=pl.BlockSpec((1, 1, HEAD_PAD), lambda b, r: (b, 0, 0)),
        scratch_shapes=[pltpu.VMEM((1, C_PAD), jnp.float32)],
        compiler_params=pltpu.CompilerParams(
            dimension_semantics=("parallel", "arbitrary")),
    )(patches, meta_p,
      hp["conv_w"], hp["conv_ss"],
      hp["fc_w"], hp["m1_w"], hp["m2_w"], hp["ow_cnn"], hp["ow_meta"],
      hp["vec600"], hp["vec150"], hp["out_b"])
    return out[:, 0, :HEAD_OUT]


# ----------------------------- params --------------------------------------

def init_params(key):
    ks = jax.random.split(key, 8)
    f32 = jnp.float32

    def dense(k, fan_in, fan_out):
        w = jax.random.normal(k, (fan_in, fan_out), f32) / jnp.sqrt(f32(fan_in))
        b = jnp.zeros((fan_out,), f32)
        return w, b

    p = {}
    # stem conv 3x3 stride 2, 3 -> FEAT_CH (bias=False), then BN+Swish
    p["conv_w"] = (jax.random.normal(ks[0], (K_RAW, FEAT_CH), f32)
                   / jnp.sqrt(f32(K_RAW)))
    p["conv_scale"], p["conv_shift"] = _fold_bn(
        jnp.ones((FEAT_CH,), f32), jnp.zeros((FEAT_CH,), f32),
        jnp.zeros((FEAT_CH,), f32), jnp.ones((FEAT_CH,), f32))
    # backbone._fc : Linear(in_features, out_neurons)
    p["fc_w"], p["fc_b"] = dense(ks[1], FEAT_CH, OUT_NEURONS)
    # meta_fc layer 1
    p["m1_w"], p["m1_b"] = dense(ks[2], N_META, OUT_NEURONS)
    p["m1_scale"], p["m1_shift"] = _fold_bn(
        jnp.ones((OUT_NEURONS,), f32), jnp.zeros((OUT_NEURONS,), f32),
        jnp.zeros((OUT_NEURONS,), f32), jnp.ones((OUT_NEURONS,), f32))
    # meta_fc layer 2
    p["m2_w"], p["m2_b"] = dense(ks[3], OUT_NEURONS, META_NEURONS)
    p["m2_scale"], p["m2_shift"] = _fold_bn(
        jnp.ones((META_NEURONS,), f32), jnp.zeros((META_NEURONS,), f32),
        jnp.zeros((META_NEURONS,), f32), jnp.ones((META_NEURONS,), f32))
    # output Linear(600 + 150, 2)
    p["out_w"], p["out_b"] = dense(ks[4], OUT_NEURONS + META_NEURONS, 2)
    return p


def pack_params(p):
    """Pad to lane-dense kernel layouts; cast matmul weights to bf16 (f32
    accumulation in-kernel); pack tiny bias/BN vectors into slabs; split
    out_w so the concat disappears."""
    f32 = jnp.float32
    bf16 = jnp.bfloat16
    hp = {}
    hp["conv_w"] = _pad_to(p["conv_w"], (K_PAD, C_PAD)).astype(bf16)
    hp["conv_ss"] = jnp.stack(
        [_pad_to(p["conv_scale"], (C_PAD,)),
         _pad_to(p["conv_shift"], (C_PAD,))], axis=0).astype(f32)       # (2, C_PAD)

    hp["fc_w"] = _pad_to(p["fc_w"], (C_PAD, OUT_PAD)).astype(bf16)
    hp["m1_w"] = _pad_to(p["m1_w"], (META_IN_PAD, OUT_PAD)).astype(bf16)
    hp["m2_w"] = _pad_to(p["m2_w"], (OUT_PAD, META_PAD)).astype(bf16)
    hp["ow_cnn"] = _pad_to(p["out_w"][:OUT_NEURONS], (OUT_PAD, HEAD_PAD)).astype(bf16)
    hp["ow_meta"] = _pad_to(p["out_w"][OUT_NEURONS:], (META_PAD, HEAD_PAD)).astype(bf16)

    hp["vec600"] = jnp.stack(
        [_pad_to(p["fc_b"], (OUT_PAD,)),
         _pad_to(p["m1_b"], (OUT_PAD,)),
         _pad_to(p["m1_scale"], (OUT_PAD,)),
         _pad_to(p["m1_shift"], (OUT_PAD,))], axis=0).astype(f32)       # (4, OUT_PAD)
    hp["vec150"] = jnp.stack(
        [_pad_to(p["m2_b"], (META_PAD,)),
         _pad_to(p["m2_scale"], (META_PAD,)),
         _pad_to(p["m2_shift"], (META_PAD,))], axis=0).astype(f32)      # (3, META_PAD)
    hp["out_b"] = _pad_to(p["out_b"], (HEAD_PAD,)).reshape(1, HEAD_PAD).astype(f32)
    return hp


# ----------------------------- forward -------------------------------------

def effnet_forward(hp, x_nchw, meta):
    """x_nchw: (B, 3, H, W) float32, meta: (B, 9) float32 -> (B, 2)."""
    B, _, H, W = x_nchw.shape
    OH, OW = H // 2, W // 2                                  # stride 2, pad 1
    ohw = OH * OW
    tile_r, ohw_pad = _choose_row_tiling(ohw)

    # im2col in bf16 (XLA fuses transpose+pad+gather into one patches write).
    # TODO(synk): move the 3x3 tap gather into the kernel (strided VMEM loads
    # / 9 shifted dots) to kill this (B, OHW, 32) HBM round-trip entirely.
    x = jnp.transpose(x_nchw, (0, 2, 3, 1))                  # NHWC
    xpad = jnp.pad(x, ((0, 0), (1, 1), (1, 1), (0, 0)))      # pad=1
    taps = [xpad[:, dy:dy + 2 * OH:2, dx:dx + 2 * OW:2, :]   # (kh, kw, cin)
            for dy in range(3) for dx in range(3)]
    patches = jnp.concatenate(taps, axis=-1).reshape(B, ohw, K_RAW)
    patches = jnp.pad(patches,
                      ((0, 0), (0, ohw_pad - ohw), (0, K_PAD - K_RAW)))
    patches = patches.astype(jnp.bfloat16)                   # (B, ohw_pad, 32)

    meta_p = jnp.pad(meta, ((0, 0), (0, META_IN_PAD - N_META)))
    meta_p = meta_p.reshape(B, 1, META_IN_PAD)

    # single fused kernel: stem conv + BN + Swish + GeM + full head
    return pallas_effnet(patches, meta_p, hp,
                         batch=B, ohw=ohw, ohw_pad=ohw_pad, tile_r=tile_r)


if __name__ == "__main__":
    key = jax.random.PRNGKey(0)
    k_param, k_x, k_meta = jax.random.split(key, 3)

    params = init_params(k_param)
    packed = pack_params(params)

    x = jax.random.normal(k_x, (2, 3, 16, 16), jnp.float32)    # NCHW like PyTorch
    meta_data = jax.random.normal(k_meta, (2, N_META), jnp.float32)

    fwd = jax.jit(effnet_forward)
    out = fwd(packed, x, meta_data)
    jax.block_until_ready(out)
    assert out.shape == (2, HEAD_OUT) and out.dtype == jnp.float32
    print("KERNEL_OK")
</pallas_src>

<mosaic_0001>
module attributes {stable_mosaic.version = 11 : i64} {
  func.func @_effnet_kernel(%arg0: i32, %arg1: i32, %arg2: memref<1x32x32xbf16, #tpu.memory_space<vmem>>, %arg3: memref<1x1x16xf32, #tpu.memory_space<vmem>>, %arg4: memref<32x128xbf16, #tpu.memory_space<vmem>>, %arg5: memref<2x128xf32, #tpu.memory_space<vmem>>, %arg6: memref<128x640xbf16, #tpu.memory_space<vmem>>, %arg7: memref<16x640xbf16, #tpu.memory_space<vmem>>, %arg8: memref<640x256xbf16, #tpu.memory_space<vmem>>, %arg9: memref<640x128xbf16, #tpu.memory_space<vmem>>, %arg10: memref<256x128xbf16, #tpu.memory_space<vmem>>, %arg11: memref<4x640xf32, #tpu.memory_space<vmem>>, %arg12: memref<3x256xf32, #tpu.memory_space<vmem>>, %arg13: memref<1x128xf32, #tpu.memory_space<vmem>>, %arg14: memref<1x1x128xf32, #tpu.memory_space<vmem>>, %arg15: memref<1x128xf32, #tpu.memory_space<vmem>>) attributes {dimension_semantics = [#tpu.dimension_semantics<parallel>, #tpu.dimension_semantics<arbitrary>], iteration_bounds = array<i64: 2, 2>, scalar_prefetch = 0 : i64, scratch_operands = 1 : i64, tpu.core_type = #tpu.core_type<tc>, window_params = [{transform_indices = @transform_0, window_bounds = array<i64: 1, 32, 32>}, {transform_indices = @transform_1, window_bounds = array<i64: 1, 1, 16>}, {pipeline_mode = #tpu.pipeline_mode<synchronous>, transform_indices = @transform_2, window_bounds = array<i64: 32, 128>}, {pipeline_mode = #tpu.pipeline_mode<synchronous>, transform_indices = @transform_3, window_bounds = array<i64: 2, 128>}, {pipeline_mode = #tpu.pipeline_mode<synchronous>, transform_indices = @transform_4, window_bounds = array<i64: 128, 640>}, {pipeline_mode = #tpu.pipeline_mode<synchronous>, transform_indices = @transform_5, window_bounds = array<i64: 16, 640>}, {pipeline_mode = #tpu.pipeline_mode<synchronous>, transform_indices = @transform_6, window_bounds = array<i64: 640, 256>}, {pipeline_mode = #tpu.pipeline_mode<synchronous>, transform_indices = @transform_7, window_bounds = array<i64: 640, 128>}, {pipeline_mode = #tpu.pipeline_mode<synchronous>, transform_indices = @transform_8, window_bounds = array<i64: 256, 128>}, {pipeline_mode = #tpu.pipeline_mode<synchronous>, transform_indices = @transform_9, window_bounds = array<i64: 4, 640>}, {pipeline_mode = #tpu.pipeline_mode<synchronous>, transform_indices = @transform_10, window_bounds = array<i64: 3, 256>}, {pipeline_mode = #tpu.pipeline_mode<synchronous>, transform_indices = @transform_11, window_bounds = array<i64: 1, 128>}, {transform_indices = @transform_12, window_bounds = array<i64: 1, 1, 128>}]} {
    %c0_i32 = arith.constant 0 : i32
    %0 = arith.cmpi eq, %arg1, %c0_i32 : i32
    %1 = arith.extui %0 : i1 to i32
    %c0_i32_0 = arith.constant 0 : i32
    %2 = arith.cmpi ne, %1, %c0_i32_0 : i32
    scf.if %2 {
      %cst_15 = arith.constant 0.000000e+00 : f32
      %32 = vector.broadcast %cst_15 : f32 to vector<1x128xf32>
      %c0_16 = arith.constant 0 : index
      %c0_17 = arith.constant 0 : index
      %33 = vector.load %arg15[%c0_16, %c0_17] : memref<1x128xf32, #tpu.memory_space<vmem>>, vector<1x128xf32>
      tpu.vector_store %arg15[%c0_16, %c0_17], %32 {strides = array<i32>} : memref<1x128xf32, #tpu.memory_space<vmem>>, vector<1x128xf32>,
    } else {
    }
    %c0 = arith.constant 0 : index
    %c0_1 = arith.constant 0 : index
    %3 = vector.load %arg5[%c0, %c0_1] : memref<2x128xf32, #tpu.memory_space<vmem>>, vector<2x128xf32>
    %4 = vector.extract_strided_slice %3 {offsets = [0, 0], sizes = [1, 128], strides = [1, 1]} : vector<2x128xf32> to vector<1x128xf32>
    %5 = vector.extract_strided_slice %3 {offsets = [1, 0], sizes = [1, 128], strides = [1, 1]} : vector<2x128xf32> to vector<1x128xf32>
    %c0_2 = arith.constant 0 : index
    %c0_3 = arith.constant 0 : index
    %c0_4 = arith.constant 0 : index
    %6 = vector.load %arg2[%c0_2, %c0_3, %c0_4] : memref<1x32x32xbf16, #tpu.memory_space<vmem>>, vector<1x32x32xbf16>
    %7 = vector.shape_cast %6 : vector<1x32x32xbf16> to vector<32x32xbf16>
    %c0_5 = arith.constant 0 : index
    %c0_6 = arith.constant 0 : index
    %8 = vector.load %arg4[%c0_5, %c0_6] : memref<32x128xbf16, #tpu.memory_space<vmem>>, vector<32x128xbf16>
    %cst = arith.constant dense<0.000000e+00> : vector<32x128xf32>
    %9 = tpu.matmul %7, %8, %cst {dimension_numbers = #tpu.dot_dimension_numbers<[1], [0], [0], [1], [0, 0, 1, 1], [], []>} : vector<32x32xbf16>, vector<32x128xbf16>, vector<32x128xf32> -> vector<32x128xf32>
    %10 = vector.broadcast %4 : vector<1x128xf32> to vector<32x128xf32>
    %11 = arith.mulf %9, %10 : vector<32x128xf32>
    %12 = vector.broadcast %5 : vector<1x128xf32> to vector<32x128xf32>
    %13 = arith.addf %11, %12 : vector<32x128xf32>
    %14 = arith.negf %13 : vector<32x128xf32>
    %15 = math.exp %14 : vector<32x128xf32>
    %cst_7 = arith.constant 1.000000e+00 : f32
    %16 = vector.broadcast %cst_7 : f32 to vector<32x128xf32>
    %17 = arith.addf %16, %15 : vector<32x128xf32>
    %18 = arith.divf %16, %17 : vector<32x128xf32>
    %19 = arith.mulf %13, %18 : vector<32x128xf32>
    %cst_8 = arith.constant 9.99999997E-7 : f32
    %20 = vector.broadcast %cst_8 : f32 to vector<32x128xf32>
    %21 = arith.maximumf %19, %20 : vector<32x128xf32>
    %c0_9 = arith.constant 0 : index
    %c0_10 = arith.constant 0 : index
    %22 = vector.load %arg15[%c0_9, %c0_10] : memref<1x128xf32, #tpu.memory_space<vmem>>, vector<1x128xf32>
    %23 = arith.mulf %21, %21 : vector<32x128xf32>
    %24 = arith.mulf %23, %21 : vector<32x128xf32>
    %cst_11 = arith.constant dense<0.000000e+00> : vector<128xf32>
    %25 = vector.multi_reduction <add>, %24, %cst_11 [0] : vector<32x128xf32> to vector<128xf32>
    %26 = vector.shape_cast %25 : vector<128xf32> to vector<1x128xf32>
    %27 = arith.addf %22, %26 : vector<1x128xf32>
    %c0_12 = arith.constant 0 : index
    %c0_13 = arith.constant 0 : index
    %28 = vector.load %arg15[%c0_12, %c0_13] : memref<1x128xf32, #tpu.memory_space<vmem>>, vector<1x128xf32>
    tpu.vector_store %arg15[%c0_12, %c0_13], %27 {strides = array<i32>} : memref<1x128xf32, #tpu.memory_space<vmem>>, vector<1x128xf32>,
    %c1_i32 = arith.constant 1 : i32
    %29 = arith.cmpi eq, %arg1, %c1_i32 : i32
    %30 = arith.extui %29 : i1 to i32
    %c0_i32_14 = arith.constant 0 : i32
    %31 = arith.cmpi ne, %30, %c0_i32_14 : i32
    scf.if %31 {
      %32 = arith.negf %5 : vector<1x128xf32>
      %33 = math.exp %32 : vector<1x128xf32>
      %cst_15 = arith.constant 1.000000e+00 : f32
      %34 = vector.broadcast %cst_15 : f32 to vector<1x128xf32>
      %35 = arith.addf %34, %33 : vector<1x128xf32>
      %36 = arith.divf %34, %35 : vector<1x128xf32>
      %37 = arith.mulf %5, %36 : vector<1x128xf32>
      %cst_16 = arith.constant 9.99999997E-7 : f32
      %38 = vector.broadcast %cst_16 : f32 to vector<1x128xf32>
      %39 = arith.maximumf %37, %38 : vector<1x128xf32>
      %40 = arith.mulf %39, %39 : vector<1x128xf32>
      %41 = arith.mulf %40, %39 : vector<1x128xf32>
      %c0_17 = arith.constant 0 : index
      %c0_18 = arith.constant 0 : index
      %42 = vector.load %arg15[%c0_17, %c0_18] : memref<1x128xf32, #tpu.memory_space<vmem>>, vector<1x128xf32>
      %cst_19 = arith.constant 0.000000e+00 : f32
      %43 = vector.broadcast %cst_19 : f32 to vector<1x128xf32>
      %44 = arith.mulf %43, %41 : vector<1x128xf32>
      %45 = arith.subf %42, %44 : vector<1x128xf32>
      %cst_20 = arith.constant 1.562500e-02 : f32
      %46 = vector.broadcast %cst_20 : f32 to vector<1x128xf32>
      %47 = arith.mulf %45, %46 : vector<1x128xf32>
      %48 = math.log %47 : vector<1x128xf32>
      %cst_21 = arith.constant 0.333333343 : f32
      %49 = vector.broadcast %cst_21 : f32 to vector<1x128xf32>
      %50 = arith.mulf %48, %49 : vector<1x128xf32>
      %51 = math.exp %50 : vector<1x128xf32>
      %c0_22 = arith.constant 0 : index
      %c0_23 = arith.constant 0 : index
      %52 = vector.load %arg11[%c0_22, %c0_23] : memref<4x640xf32, #tpu.memory_space<vmem>>, vector<4x640xf32>
      %c0_24 = arith.constant 0 : index
      %c0_25 = arith.constant 0 : index
      %53 = vector.load %arg12[%c0_24, %c0_25] : memref<3x256xf32, #tpu.memory_space<vmem>>, vector<3x256xf32>
      %c0_26 = arith.constant 0 : index
      %c0_27 = arith.constant 0 : index
      %54 = vector.load %arg6[%c0_26, %c0_27] : memref<128x640xbf16, #tpu.memory_space<vmem>>, vector<128x640xbf16>
      %cst_28 = arith.constant dense<0.000000e+00> : vector<1x640xf32>
      %55 = tpu.matmul %51, %54, %cst_28 {dimension_numbers = #tpu.dot_dimension_numbers<[1], [0], [0], [1], [0, 0, 1, 1], [], []>} : vector<1x128xf32>, vector<128x640xbf16>, vector<1x640xf32> -> vector<1x640xf32>
      %56 = vector.extract_strided_slice %52 {offsets = [0, 0], sizes = [1, 640], strides = [1, 1]} : vector<4x640xf32> to vector<1x640xf32>
      %57 = arith.addf %55, %56 : vector<1x640xf32>
      %c0_29 = arith.constant 0 : index
      %c0_30 = arith.constant 0 : index
      %c0_31 = arith.constant 0 : index
      %58 = vector.load %arg3[%c0_29, %c0_30, %c0_31] : memref<1x1x16xf32, #tpu.memory_space<vmem>>, vector<1x1x16xf32>
      %59 = vector.shape_cast %58 : vector<1x1x16xf32> to vector<1x16xf32>
      %c0_32 = arith.constant 0 : index
      %c0_33 = arith.constant 0 : index
      %60 = vector.load %arg7[%c0_32, %c0_33] : memref<16x640xbf16, #tpu.memory_space<vmem>>, vector<16x640xbf16>
      %cst_34 = arith.constant dense<0.000000e+00> : vector<1x640xf32>
      %61 = tpu.matmul %59, %60, %cst_34 {dimension_numbers = #tpu.dot_dimension_numbers<[1], [0], [0], [1], [0, 0, 1, 1], [], []>} : vector<1x16xf32>, vector<16x640xbf16>, vector<1x640xf32> -> vector<1x640xf32>
      %62 = vector.extract_strided_slice %52 {offsets = [1, 0], sizes = [1, 640], strides = [1, 1]} : vector<4x640xf32> to vector<1x640xf32>
      %63 = arith.addf %61, %62 : vector<1x640xf32>
      %64 = vector.extract_strided_slice %52 {offsets = [2, 0], sizes = [1, 640], strides = [1, 1]} : vector<4x640xf32> to vector<1x640xf32>
      %65 = arith.mulf %63, %64 : vector<1x640xf32>
      %66 = vector.extract_strided_slice %52 {offsets = [3, 0], sizes = [1, 640], strides = [1, 1]} : vector<4x640xf32> to vector<1x640xf32>
      %67 = arith.addf %65, %66 : vector<1x640xf32>
      %cst_35 = arith.constant 0.000000e+00 : f32
      %68 = vector.broadcast %cst_35 : f32 to vector<1x640xf32>
      %69 = arith.maximumf %67, %68 : vector<1x640xf32>
      %c0_36 = arith.constant 0 : index
      %c0_37 = arith.constant 0 : index
      %70 = vector.load %arg8[%c0_36, %c0_37] : memref<640x256xbf16, #tpu.memory_space<vmem>>, vector<640x256xbf16>
      %cst_38 = arith.constant dense<0.000000e+00> : vector<1x256xf32>
      %71 = tpu.matmul %69, %70, %cst_38 {dimension_numbers = #tpu.dot_dimension_numbers<[1], [0], [0], [1], [0, 0, 1, 1], [], []>} : vector<1x640xf32>, vector<640x256xbf16>, vector<1x256xf32> -> vector<1x256xf32>
      %72 = vector.extract_strided_slice %53 {offsets = [0, 0], sizes = [1, 256], strides = [1, 1]} : vector<3x256xf32> to vector<1x256xf32>
      %73 = arith.addf %71, %72 : vector<1x256xf32>
      %74 = vector.extract_strided_slice %53 {offsets = [1, 0], sizes = [1, 256], strides = [1, 1]} : vector<3x256xf32> to vector<1x256xf32>
      %75 = arith.mulf %73, %74 : vector<1x256xf32>
      %76 = vector.extract_strided_slice %53 {offsets = [2, 0], sizes = [1, 256], strides = [1, 1]} : vector<3x256xf32> to vector<1x256xf32>
      %77 = arith.addf %75, %76 : vector<1x256xf32>
      %cst_39 = arith.constant 0.000000e+00 : f32
      %78 = vector.broadcast %cst_39 : f32 to vector<1x256xf32>
      %79 = arith.maximumf %77, %78 : vector<1x256xf32>
      %c0_40 = arith.constant 0 : index
      %c0_41 = arith.constant 0 : index
      %80 = vector.load %arg9[%c0_40, %c0_41] : memref<640x128xbf16, #tpu.memory_space<vmem>>, vector<640x128xbf16>
      %cst_42 = arith.constant dense<0.000000e+00> : vector<1x128xf32>
      %81 = tpu.matmul %57, %80, %cst_42 {dimension_numbers = #tpu.dot_dimension_numbers<[1], [0], [0], [1], [0, 0, 1, 1], [], []>} : vector<1x640xf32>, vector<640x128xbf16>, vector<1x128xf32> -> vector<1x128xf32>
      %c0_43 = arith.constant 0 : index
      %c0_44 = arith.constant 0 : index
      %82 = vector.load %arg10[%c0_43, %c0_44] : memref<256x128xbf16, #tpu.memory_space<vmem>>, vector<256x128xbf16>
      %cst_45 = arith.constant dense<0.000000e+00> : vector<1x128xf32>
      %83 = tpu.matmul %79, %82, %cst_45 {dimension_numbers = #tpu.dot_dimension_numbers<[1], [0], [0], [1], [0, 0, 1, 1], [], []>} : vector<1x256xf32>, vector<256x128xbf16>, vector<1x128xf32> -> vector<1x128xf32>
      %84 = arith.addf %81, %83 : vector<1x128xf32>
      %c0_46 = arith.constant 0 : index
      %c0_47 = arith.constant 0 : index
      %85 = vector.load %arg13[%c0_46, %c0_47] : memref<1x128xf32, #tpu.memory_space<vmem>>, vector<1x128xf32>
      %86 = arith.addf %84, %85 : vector<1x128xf32>
      %87 = vector.shape_cast %86 : vector<1x128xf32> to vector<1x1x128xf32>
      %c0_48 = arith.constant 0 : index
      %c0_49 = arith.constant 0 : index
      %c0_50 = arith.constant 0 : index
      %88 = vector.load %arg14[%c0_48, %c0_49, %c0_50] : memref<1x1x128xf32, #tpu.memory_space<vmem>>, vector<1x1x128xf32>
      tpu.vector_store %arg14[%c0_48, %c0_49, %c0_50], %87 {strides = array<i32>} : memref<1x1x128xf32, #tpu.memory_space<vmem>>, vector<1x1x128xf32>,
    } else {
    }
    return
  }
  func.func @transform_0(%arg0: i32, %arg1: i32) -> (i32, i32, i32) {
    %c0_i32 = arith.constant 0 : i32
    %c0_i32_0 = arith.constant 0 : i32
    return %arg0, %arg1, %c0_i32 : i32, i32, i32
  }
  func.func @transform_1(%arg0: i32, %arg1: i32) -> (i32, i32, i32) {
    %c0_i32 = arith.constant 0 : i32
    %c0_i32_0 = arith.constant 0 : i32
    %c0_i32_1 = arith.constant 0 : i32
    return %arg0, %c0_i32, %c0_i32_0 : i32, i32, i32
  }
  func.func @transform_2(%arg0: i32, %arg1: i32) -> (i32, i32) {
    %c0_i32 = arith.constant 0 : i32
    %c0_i32_0 = arith.constant 0 : i32
    %c0_i32_1 = arith.constant 0 : i32
    return %c0_i32, %c0_i32_0 : i32, i32
  }
  func.func @transform_3(%arg0: i32, %arg1: i32) -> (i32, i32) {
    %c0_i32 = arith.constant 0 : i32
    %c0_i32_0 = arith.constant 0 : i32
    %c0_i32_1 = arith.constant 0 : i32
    return %c0_i32, %c0_i32_0 : i32, i32
  }
  func.func @transform_4(%arg0: i32, %arg1: i32) -> (i32, i32) {
    %c0_i32 = arith.constant 0 : i32
    %c0_i32_0 = arith.constant 0 : i32
    %c0_i32_1 = arith.constant 0 : i32
    return %c0_i32, %c0_i32_0 : i32, i32
  }
  func.func @transform_5(%arg0: i32, %arg1: i32) -> (i32, i32) {
    %c0_i32 = arith.constant 0 : i32
    %c0_i32_0 = arith.constant 0 : i32
    %c0_i32_1 = arith.constant 0 : i32
    return %c0_i32, %c0_i32_0 : i32, i32
  }
  func.func @transform_6(%arg0: i32, %arg1: i32) -> (i32, i32) {
    %c0_i32 = arith.constant 0 : i32
    %c0_i32_0 = arith.constant 0 : i32
    %c0_i32_1 = arith.constant 0 : i32
    return %c0_i32, %c0_i32_0 : i32, i32
  }
  func.func @transform_7(%arg0: i32, %arg1: i32) -> (i32, i32) {
    %c0_i32 = arith.constant 0 : i32
    %c0_i32_0 = arith.constant 0 : i32
    %c0_i32_1 = arith.constant 0 : i32
    return %c0_i32, %c0_i32_0 : i32, i32
  }
  func.func @transform_8(%arg0: i32, %arg1: i32) -> (i32, i32) {
    %c0_i32 = arith.constant 0 : i32
    %c0_i32_0 = arith.constant 0 : i32
    %c0_i32_1 = arith.constant 0 : i32
    return %c0_i32, %c0_i32_0 : i32, i32
  }
  func.func @transform_9(%arg0: i32, %arg1: i32) -> (i32, i32) {
    %c0_i32 = arith.constant 0 : i32
    %c0_i32_0 = arith.constant 0 : i32
    %c0_i32_1 = arith.constant 0 : i32
    return %c0_i32, %c0_i32_0 : i32, i32
  }
  func.func @transform_10(%arg0: i32, %arg1: i32) -> (i32, i32) {
    %c0_i32 = arith.constant 0 : i32
    %c0_i32_0 = arith.constant 0 : i32
    %c0_i32_1 = arith.constant 0 : i32
    return %c0_i32, %c0_i32_0 : i32, i32
  }
  func.func @transform_11(%arg0: i32, %arg1: i32) -> (i32, i32) {
    %c0_i32 = arith.constant 0 : i32
    %c0_i32_0 = arith.constant 0 : i32
    %c0_i32_1 = arith.constant 0 : i32
    return %c0_i32, %c0_i32_0 : i32, i32
  }
  func.func @transform_12(%arg0: i32, %arg1: i32) -> (i32, i32, i32) {
    %c0_i32 = arith.constant 0 : i32
    %c0_i32_0 = arith.constant 0 : i32
    %c0_i32_1 = arith.constant 0 : i32
    return %arg0, %c0_i32, %c0_i32_0 : i32, i32, i32
  }
}

</mosaic_0001>

<llo_original>
// kernel: effnet_forward.1
$region0: #{effnet_forward.1}
  #allocation0 [shape = 'u32[]', space=smem, size = 0x4, offset = 0x4, fixed_abs, tag = 'smem constant byte address 0x4 - core index']
  #allocation1 [shape = 'u32[72,128]{1,0:T(1,128)}', space=vmem, size = 0x9000, scoped, tag = 'internal scratch']
  #allocation2 [shape = 'f32[1,128]{1,0:T(1,128)}', space=vmem, size = 0x200, scoped, tag = 'scratch operand']
  %s0 = inlined_call_operand.vmem [shape: bf16[2,64,32], index: 0, kind: input, shape index: {}]
  %s1 = inlined_call_operand.vmem [shape: f32[2,1,16], index: 1, kind: input, shape index: {}]
  %s2 = inlined_call_operand.vmem [shape: bf16[32,128], index: 2, kind: input, shape index: {}]
  %s3 = inlined_call_operand.vmem [shape: f32[2,128], index: 3, kind: input, shape index: {}]
  %s4 = inlined_call_operand.vmem [shape: bf16[128,640], index: 4, kind: input, shape index: {}]
  %s5 = inlined_call_operand.vmem [shape: bf16[16,640], index: 5, kind: input, shape index: {}]
  %s6 = inlined_call_operand.vmem [shape: bf16[640,256], index: 6, kind: input, shape index: {}]
  %s7 = inlined_call_operand.vmem [shape: bf16[640,128], index: 7, kind: input, shape index: {}]
  %s8 = inlined_call_operand.vmem [shape: bf16[256,128], index: 8, kind: input, shape index: {}]
  %s9 = inlined_call_operand.vmem [shape: f32[4,640], index: 9, kind: input, shape index: {}]
  %s10 = inlined_call_operand.vmem [shape: f32[3,256], index: 10, kind: input, shape index: {}]
  %s11 = inlined_call_operand.vmem [shape: f32[1,128], index: 11, kind: input, shape index: {}]
  %s12 = inlined_call_operand.hbm [shape: f32[2,1,128], index: 12, kind: output, shape index: {}]
  %s13 = sld [smem:[#allocation0]]
  $region89: #{effnet_forward.1} parent=0
    _
  %s15 = ssub.s32 1, %s13
  %s16 = scalar_select 0, %s15, %s13
  $region1: #{effnet_forward.1} parent=0
    #allocation3 [shape = 'u8[1024]{0}', space=vmem, size = 0x400, scoped, tag = 'output window, operand 0']
    #allocation4 [shape = 's32[2]{0}', space=sflag, size = 0x8, scoped, tag = 'scoped memory for effnet_forward.1']
    %17 = vsyncpa [#allocation4], 0
    %s18 = scalar_lea.sflag [#allocation4], 1
    %19 = vsyncpa %s18, 0
    loop: start=0, step=1, limit=6
    $region2: #{effnet_forward.1} parent=1 // loop_pre_header
      _
    $region3: #{effnet_forward.1} parent=1 // loop_header
      %s21 = sphi 0, %s25
      %p22 = scmp.ge.s32.totalorder %s21, 6
      %s28 = sphi 0, %s40
      %s29 = sphi 0, %s36
      %s30 = sphi 0, %s28
      %s31 = sphi 0, %s29
      %s32 = sphi 0, %s30
      %s33 = sphi 0, %s31
      %s45 = sphi 0, %s47
      %s48 = sphi 0, %s45
      %s49 = sphi 0, %s48
      %s65 = sphi 0, %s49
      %s71 = sphi 0, %s73
      %s74 = sphi 0, %s71
      %s75 = sphi 0, %s74
      %s91 = sphi 0, %s75
      %s95 = sphi 0, %s95
      %s97 = sphi 0, %s95
      %s98 = sphi 0, %s97
      %s112 = sphi 0, %s98
      %s116 = sphi 0, %s116
      %s118 = sphi 0, %s116
      %s119 = sphi 0, %s118
      %s133 = sphi 0, %s119
      %s137 = sphi 0, %s137
      %s139 = sphi 0, %s137
      %s140 = sphi 0, %s139
      %s154 = sphi 0, %s140
      %s158 = sphi 0, %s158
      %s160 = sphi 0, %s158
      %s161 = sphi 0, %s160
      %s175 = sphi 0, %s161
      %s179 = sphi 0, %s179
      %s181 = sphi 0, %s179
      %s182 = sphi 0, %s181
      %s196 = sphi 0, %s182
      %s200 = sphi 0, %s200
      %s202 = sphi 0, %s200
      %s203 = sphi 0, %s202
      %s217 = sphi 0, %s203
      %s221 = sphi 0, %s221
      %s223 = sphi 0, %s221
      %s224 = sphi 0, %s223
      %s238 = sphi 0, %s224
      %s242 = sphi 0, %s242
      %s244 = sphi 0, %s242
      %s245 = sphi 0, %s244
      %s259 = sphi 0, %s245
      %s263 = sphi 0, %s263
      %s265 = sphi 0, %s263
      %s266 = sphi 0, %s265
      %s280 = sphi 0, %s266
      %s284 = sphi 0, %s284
      %s286 = sphi 0, %s284
      %s287 = sphi 0, %s286
      %s301 = sphi 0, %s287
      %s307 = sphi 0, %s309
      %s310 = sphi 0, %s307
      %s311 = sphi 0, %s310
      %s327 = sphi 0, %s311
    $region4: #{effnet_forward.1} parent=1 // loop_header_branch
      %24 = sbr.rel (%p22) target = $region8
    $region5: #{effnet_forward.1} parent=1 // loop_body
      %s26 = ssub.s32 %s21, 1
      %s27 = ssub.s32 %s21, 2
      %s34 = sadd.s32 1, %s29
      %p35 = scmp.ge.s32.totalorder %s34, 2
      %s36 = scalar_select %p35, 0, %s34
      %s37 = sadd.s32 1, %s28
      %s38 = scalar_select %p35, %s37, %s28
      %p39 = scmp.ge.s32.totalorder %s38, 2
      %s40 = scalar_select %p39, 0, %s38
      %s41 = ssub.s32 %s28, %s40
      %s42 = ssub.s32 %s29, %s36
      %s43 = sor.u32 %s41, %s42
      %p44 = scmp.eq.s32.totalorder %s43, 0
      %s46 = sadd.s32 %s45, 1
      %s47 = scalar_select %p44, %s45, %s46
      %p50 = pneg %p44
      %p51 = scmp.eq.s32.totalorder %s21, 3
      %p52 = por %p50, %p51
      %p53 = scmp.ne.s32.totalorder %s45, %s48
      %p54 = scmp.eq.s32.totalorder %s21, 0
      %p55 = por %p53, %p54
      %p56 = scmp.ne.s32.totalorder %s45, %s48
      %p57 = scmp.eq.s32.totalorder %s26, 3
      %p58 = por %p56, %p57
      %p59 = scmp.ne.s32.totalorder %s48, %s49
      %p60 = scmp.eq.s32.totalorder %s26, 0
      %p61 = por %p59, %p60
      %p62 = scmp.ne.s32.totalorder %s48, %s49
      %p63 = scmp.eq.s32.totalorder %s27, 3
      %p64 = por %p62, %p63
      %p66 = scmp.ne.s32.totalorder %s49, %s65
      %p67 = scmp.eq.s32.totalorder %s27, 0
      %p68 = por %p66, %p67
      %s69 = ssub.s32 %s28, %s40
      %p70 = scmp.eq.s32.totalorder %s69, 0
      %s72 = sadd.s32 %s71, 1
      %s73 = scalar_select %p70, %s71, %s72
      %p76 = pneg %p70
      %p77 = scmp.eq.s32.totalorder %s21, 3
      %p78 = por %p76, %p77
      %p79 = scmp.ne.s32.totalorder %s71, %s74
      %p80 = scmp.eq.s32.totalorder %s21, 0
      %p81 = por %p79, %p80
      %p82 = scmp.ne.s32.totalorder %s71, %s74
      %p83 = scmp.eq.s32.totalorder %s26, 3
      %p84 = por %p82, %p83
      %p85 = scmp.ne.s32.totalorder %s74, %s75
      %p86 = scmp.eq.s32.totalorder %s26, 0
      %p87 = por %p85, %p86
      %p88 = scmp.ne.s32.totalorder %s74, %s75
      %p89 = scmp.eq.s32.totalorder %s27, 3
      %p90 = por %p88, %p89
      %p92 = scmp.ne.s32.totalorder %s75, %s91
      %p93 = scmp.eq.s32.totalorder %s27, 0
      %p94 = por %p92, %p93
      %s96 = sadd.s32 %s95, 1
      %p99 = scmp.eq.s32.totalorder %s21, 3
      %p100 = scmp.ne.s32.totalorder %s95, %s97
      %p101 = scmp.eq.s32.totalorder %s21, 0
      %p102 = por %p100, %p101
      %p103 = scmp.ne.s32.totalorder %s95, %s97
      %p104 = scmp.eq.s32.totalorder %s26, 3
      %p105 = por %p103, %p104
      %p106 = scmp.ne.s32.totalorder %s97, %s98
      %p107 = scmp.eq.s32.totalorder %s26, 0
      %p108 = por %p106, %p107
      %p109 = scmp.ne.s32.totalorder %s97, %s98
      %p110 = scmp.eq.s32.totalorder %s27, 3
      %p111 = por %p109, %p110
      %p113 = scmp.ne.s32.totalorder %s98, %s112
      %p114 = scmp.eq.s32.totalorder %s27, 0
      %p115 = por %p113, %p114
      %s117 = sadd.s32 %s116, 1
      %p120 = scmp.eq.s32.totalorder %s21, 3
      %p121 = scmp.ne.s32.totalorder %s116, %s118
      %p122 = scmp.eq.s32.totalorder %s21, 0
      %p123 = por %p121, %p122
      %p124 = scmp.ne.s32.totalorder %s116, %s118
      %p125 = scmp.eq.s32.totalorder %s26, 3
      %p126 = por %p124, %p125
      %p127 = scmp.ne.s32.totalorder %s118, %s119
      %p128 = scmp.eq.s32.totalorder %s26, 0
      %p129 = por %p127, %p128
      %p130 = scmp.ne.s32.totalorder %s118, %s119
      %p131 = scmp.eq.s32.totalorder %s27, 3
      %p132 = por %p130, %p131
      %p134 = scmp.ne.s32.totalorder %s119, %s133
      %p135 = scmp.eq.s32.totalorder %s27, 0
      %p136 = por %p134, %p135
      %s138 = sadd.s32 %s137, 1
      %p141 = scmp.eq.s32.totalorder %s21, 3
      %p142 = scmp.ne.s32.totalorder %s137, %s139
      %p143 = scmp.eq.s32.totalorder %s21, 0
      %p144 = por %p142, %p143
      %p145 = scmp.ne.s32.totalorder %s137, %s139
      %p146 = scmp.eq.s32.totalorder %s26, 3
      %p147 = por %p145, %p146
      %p148 = scmp.ne.s32.totalorder %s139, %s140
      %p149 = scmp.eq.s32.totalorder %s26, 0
      %p150 = por %p148, %p149
      %p151 = scmp.ne.s32.totalorder %s139, %s140
      %p152 = scmp.eq.s32.totalorder %s27, 3
      %p153 = por %p151, %p152
      %p155 = scmp.ne.s32.totalorder %s140, %s154
      %p156 = scmp.eq.s32.totalorder %s27, 0
      %p157 = por %p155, %p156
      %s159 = sadd.s32 %s158, 1
      %p162 = scmp.eq.s32.totalorder %s21, 3
      %p163 = scmp.ne.s32.totalorder %s158, %s160
      %p164 = scmp.eq.s32.totalorder %s21, 0
      %p165 = por %p163, %p164
      %p166 = scmp.ne.s32.totalorder %s158, %s160
      %p167 = scmp.eq.s32.totalorder %s26, 3
      %p168 = por %p166, %p167
      %p169 = scmp.ne.s32.totalorder %s160, %s161
      %p170 = scmp.eq.s32.totalorder %s26, 0
      %p171 = por %p169, %p170
      %p172 = scmp.ne.s32.totalorder %s160, %s161
      %p173 = scmp.eq.s32.totalorder %s27, 3
      %p174 = por %p172, %p173
      %p176 = scmp.ne.s32.totalorder %s161, %s175
      %p177 = scmp.eq.s32.totalorder %s27, 0
      %p178 = por %p176, %p177
      %s180 = sadd.s32 %s179, 1
      %p183 = scmp.eq.s32.totalorder %s21, 3
      %p184 = scmp.ne.s32.totalorder %s179, %s181
      %p185 = scmp.eq.s32.totalorder %s21, 0
      %p186 = por %p184, %p185
      %p187 = scmp.ne.s32.totalorder %s179, %s181
      %p188 = scmp.eq.s32.totalorder %s26, 3
      %p189 = por %p187, %p188
      %p190 = scmp.ne.s32.totalorder %s181, %s182
      %p191 = scmp.eq.s32.totalorder %s26, 0
      %p192 = por %p190, %p191
      %p193 = scmp.ne.s32.totalorder %s181, %s182
      %p194 = scmp.eq.s32.totalorder %s27, 3
      %p195 = por %p193, %p194
      %p197 = scmp.ne.s32.totalorder %s182, %s196
      %p198 = scmp.eq.s32.totalorder %s27, 0
      %p199 = por %p197, %p198
      %s201 = sadd.s32 %s200, 1
      %p204 = scmp.eq.s32.totalorder %s21, 3
      %p205 = scmp.ne.s32.totalorder %s200, %s202
      %p206 = scmp.eq.s32.totalorder %s21, 0
      %p207 = por %p205, %p206
      %p208 = scmp.ne.s32.totalorder %s200, %s202
      %p209 = scmp.eq.s32.totalorder %s26, 3
      %p210 = por %p208, %p209
      %p211 = scmp.ne.s32.totalorder %s202, %s203
      %p212 = scmp.eq.s32.totalorder %s26, 0
      %p213 = por %p211, %p212
      %p214 = scmp.ne.s32.totalorder %s202, %s203
      %p215 = scmp.eq.s32.totalorder %s27, 3
      %p216 = por %p214, %p215
      %p218 = scmp.ne.s32.totalorder %s203, %s217
      %p219 = scmp.eq.s32.totalorder %s27, 0
      %p220 = por %p218, %p219
      %s222 = sadd.s32 %s221, 1
      %p225 = scmp.eq.s32.totalorder %s21, 3
      %p226 = scmp.ne.s32.totalorder %s221, %s223
      %p227 = scmp.eq.s32.totalorder %s21, 0
      %p228 = por %p226, %p227
      %p229 = scmp.ne.s32.totalorder %s221, %s223
      %p230 = scmp.eq.s32.totalorder %s26, 3
      %p231 = por %p229, %p230
      %p232 = scmp.ne.s32.totalorder %s223, %s224
      %p233 = scmp.eq.s32.totalorder %s26, 0
      %p234 = por %p232, %p233
      %p235 = scmp.ne.s32.totalorder %s223, %s224
      %p236 = scmp.eq.s32.totalorder %s27, 3
      %p237 = por %p235, %p236
      %p239 = scmp.ne.s32.totalorder %s224, %s238
      %p240 = scmp.eq.s32.totalorder %s27, 0
      %p241 = por %p239, %p240
      %s243 = sadd.s32 %s242, 1
      %p246 = scmp.eq.s32.totalorder %s21, 3
      %p247 = scmp.ne.s32.totalorder %s242, %s244
      %p248 = scmp.eq.s32.totalorder %s21, 0
      %p249 = por %p247, %p248
      %p250 = scmp.ne.s32.totalorder %s242, %s244
      %p251 = scmp.eq.s32.totalorder %s26, 3
      %p252 = por %p250, %p251
      %p253 = scmp.ne.s32.totalorder %s244, %s245
      %p254 = scmp.eq.s32.totalorder %s26, 0
      %p255 = por %p253, %p254
      %p256 = scmp.ne.s32.totalorder %s244, %s245
      %p257 = scmp.eq.s32.totalorder %s27, 3
      %p258 = por %p256, %p257
      %p260 = scmp.ne.s32.totalorder %s245, %s259
      %p261 = scmp.eq.s32.totalorder %s27, 0
      %p262 = por %p260, %p261
      %s264 = sadd.s32 %s263, 1
      %p267 = scmp.eq.s32.totalorder %s21, 3
      %p268 = scmp.ne.s32.totalorder %s263, %s265
      %p269 = scmp.eq.s32.totalorder %s21, 0
      %p270 = por %p268, %p269
      %p271 = scmp.ne.s32.totalorder %s263, %s265
      %p272 = scmp.eq.s32.totalorder %s26, 3
      %p273 = por %p271, %p272
      %p274 = scmp.ne.s32.totalorder %s265, %s266
      %p275 = scmp.eq.s32.totalorder %s26, 0
      %p276 = por %p274, %p275
      %p277 = scmp.ne.s32.totalorder %s265, %s266
      %p278 = scmp.eq.s32.totalorder %s27, 3
      %p279 = por %p277, %p278
      %p281 = scmp.ne.s32.totalorder %s266, %s280
      %p282 = scmp.eq.s32.totalorder %s27, 0
      %p283 = por %p281, %p282
      %s285 = sadd.s32 %s284, 1
      %p288 = scmp.eq.s32.totalorder %s21, 3
      %p289 = scmp.ne.s32.totalorder %s284, %s286
      %p290 = scmp.eq.s32.totalorder %s21, 0
      %p291 = por %p289, %p290
      %p292 = scmp.ne.s32.totalorder %s284, %s286
      %p293 = scmp.eq.s32.totalorder %s26, 3
      %p294 = por %p292, %p293
      %p295 = scmp.ne.s32.totalorder %s286, %s287
      %p296 = scmp.eq.s32.totalorder %s26, 0
      %p297 = por %p295, %p296
      %p298 = scmp.ne.s32.totalorder %s286, %s287
      %p299 = scmp.eq.s32.totalorder %s27, 3
      %p300 = por %p298, %p299
      %p302 = scmp.ne.s32.totalorder %s287, %s301
      %p303 = scmp.eq.s32.totalorder %s27, 0
      %p304 = por %p302, %p303
      %s305 = ssub.s32 %s28, %s40
      %p306 = scmp.eq.s32.totalorder %s305, 0
      %s308 = sadd.s32 %s307, 1
      %s309 = scalar_select %p306, %s307, %s308
      %p312 = pneg %p306
      %p313 = scmp.eq.s32.totalorder %s21, 3
      %p314 = por %p312, %p313
      %p315 = scmp.ne.s32.totalorder %s307, %s310
      %p316 = scmp.eq.s32.totalorder %s21, 0
      %p317 = por %p315, %p316
      %p318 = scmp.ne.s32.totalorder %s307, %s310
      %p319 = scmp.eq.s32.totalorder %s26, 3
      %p320 = por %p318, %p319
      %p321 = scmp.ne.s32.totalorder %s310, %s311
      %p322 = scmp.eq.s32.totalorder %s26, 0
      %p323 = por %p321, %p322
      %p324 = scmp.ne.s32.totalorder %s310, %s311
      %p325 = scmp.eq.s32.totalorder %s27, 3
      %p326 = por %p324, %p325
      %p328 = scmp.ne.s32.totalorder %s311, %s327
      %p329 = scmp.eq.s32.totalorder %s27, 0
      %p330 = por %p328, %p329
      %p331 = scmp.le.s32.totalorder 1, %s21
      %p332 = scmp.lt.s32.totalorder %s21, 5
      %p333 = pnand %p331, %p332
      %p334 = pneg %p333
      // Predicated region
      $region9: #{effnet_forward.1} parent=5 // pred_check
        _
      $region10: #{effnet_forward.1} parent=5 // pred_check_branch
        %336 = sbr.rel (%p333) target = $region12
      $region11: #{effnet_forward.1} parent=5 // pred_region
        %s337 = ssub.s32 %s21, 1
        // Predicated region
        $region13: #{effnet_forward.1} parent=11 // pred_check
          %p338 = pneg %p108
        $region14: #{effnet_forward.1} parent=11 // pred_check_branch
          %340 = sbr.rel (%p338) target = $region16
        $region15: #{effnet_forward.1} parent=11 // pred_region
          _
        $region16: #{effnet_forward.1} parent=11 // pred_fallthru
          _
        // Predicated region
        $region17: #{effnet_forward.1} parent=11 // pred_check
          %p341 = pneg %p129
        $region18: #{effnet_forward.1} parent=11 // pred_check_branch
          %343 = sbr.rel (%p341) target = $region20
        $region19: #{effnet_forward.1} parent=11 // pred_region
          _
        $region20: #{effnet_forward.1} parent=11 // pred_fallthru
          _
        // Predicated region
        $region21: #{effnet_forward.1} parent=11 // pred_check
          %p344 = pneg %p150
        $region22: #{effnet_forward.1} parent=11 // pred_check_branch
          %346 = sbr.rel (%p344) target = $region24
        $region23: #{effnet_forward.1} parent=11 // pred_region
          _
        $region24: #{effnet_forward.1} parent=11 // pred_fallthru
          _
        // Predicated region
        $region25: #{effnet_forward.1} parent=11 // pred_check
          %p347 = pneg %p171
        $region26: #{effnet_forward.1} parent=11 // pred_check_branch
          %349 = sbr.rel (%p347) target = $region28
        $region27: #{effnet_forward.1} parent=11 // pred_region
          _
        $region28: #{effnet_forward.1} parent=11 // pred_fallthru
          _
        // Predicated region
        $region29: #{effnet_forward.1} parent=11 // pred_check
          %p350 = pneg %p192
        $region30: #{effnet_forward.1} parent=11 // pred_check_branch
          %352 = sbr.rel (%p350) target = $region32
        $region31: #{effnet_forward.1} parent=11 // pred_region
          _
        $region32: #{effnet_forward.1} parent=11 // pred_fallthru
          _
        // Predicated region
        $region33: #{effnet_forward.1} parent=11 // pred_check
          %p353 = pneg %p213
        $region34: #{effnet_forward.1} parent=11 // pred_check_branch
          %355 = sbr.rel (%p353) target = $region36
        $region35: #{effnet_forward.1} parent=11 // pred_region
          _
        $region36: #{effnet_forward.1} parent=11 // pred_fallthru
          _
        // Predicated region
        $region37: #{effnet_forward.1} parent=11 // pred_check
          %p356 = pneg %p234
        $region38: #{effnet_forward.1} parent=11 // pred_check_branch
          %358 = sbr.rel (%p356) target = $region40
        $region39: #{effnet_forward.1} parent=11 // pred_region
          _
        $region40: #{effnet_forward.1} parent=11 // pred_fallthru
          _
        // Predicated region
        $region41: #{effnet_forward.1} parent=11 // pred_check
          %p359 = pneg %p255
        $region42: #{effnet_forward.1} parent=11 // pred_check_branch
          %361 = sbr.rel (%p359) target = $region44
        $region43: #{effnet_forward.1} parent=11 // pred_region
          _
        $region44: #{effnet_forward.1} parent=11 // pred_fallthru
          _
        // Predicated region
        $region45: #{effnet_forward.1} parent=11 // pred_check
          %p362 = pneg %p276
        $region46: #{effnet_forward.1} parent=11 // pred_check_branch
          %364 = sbr.rel (%p362) target = $region48
        $region47: #{effnet_forward.1} parent=11 // pred_region
          _
        $region48: #{effnet_forward.1} parent=11 // pred_fallthru
          _
        // Predicated region
        $region49: #{effnet_forward.1} parent=11 // pred_check
          %p365 = pneg %p297
        $region50: #{effnet_forward.1} parent=11 // pred_check_branch
          %367 = sbr.rel (%p365) target = $region52
        $region51: #{effnet_forward.1} parent=11 // pred_region
          _
        $region52: #{effnet_forward.1} parent=11 // pred_fallthru
          _
      $region12: #{effnet_forward.1} parent=5 // pred_fallthru
        _
      %p368 = scmp.lt.s32.totalorder %s21, 4
      // Predicated region
      $region53: #{effnet_forward.1} parent=5 // pred_check
        %p369 = pneg %p368
      $region54: #{effnet_forward.1} parent=5 // pred_check_branch
        %371 = sbr.rel (%p369) target = $region56
      $region55: #{effnet_forward.1} parent=5 // pred_region
        // Predicated region
        $region57: #{effnet_forward.1} parent=55 // pred_check
          %p372 = pneg %p55
        $region58: #{effnet_forward.1} parent=55 // pred_check_branch
          %374 = sbr.rel (%p372) target = $region60
        $region59: #{effnet_forward.1} parent=55 // pred_region
          %s375 = smul.u32 4, %s29
          %p376 = scmp.lt.s32.totalorder %s28, 1
          %s377 = scalar_select %p376, %s28, 1
          %p378 = scmp.lt.s32.totalorder %s375, 7
          %s379 = scalar_select %p378, %s375, 7
          %s380 = smul.addr %s377, 8
          %s381 = sadd.s32 %s379, %s380
          %s382 = smul.addr %s381, 4
          %s383 = scalar_lea.vmem %s0, %s382
          %s384 = smul.u32 4, %s29
        $region60: #{effnet_forward.1} parent=55 // pred_fallthru
          _
        // Predicated region
        $region61: #{effnet_forward.1} parent=55 // pred_check
          %p385 = pneg %p81
        $region62: #{effnet_forward.1} parent=55 // pred_check_branch
          %387 = sbr.rel (%p385) target = $region64
        $region63: #{effnet_forward.1} parent=55 // pred_region
          %p388 = scmp.lt.s32.totalorder %s28, 1
          %s389 = scalar_select %p388, %s28, 1
          %s390 = scalar_lea.vmem %s1, %s389
        $region64: #{effnet_forward.1} parent=55 // pred_fallthru
          _
      $region56: #{effnet_forward.1} parent=5 // pred_fallthru
        _
      %p391 = scmp.le.s32.totalorder 1, %s21
      %p392 = scmp.lt.s32.totalorder %s21, 5
      %p393 = pnand %p391, %p392
      %p394 = pneg %p393
      // Predicated region
      $region65: #{effnet_forward.1} parent=5 // pred_check
        _
      $region66: #{effnet_forward.1} parent=5 // pred_check_branch
        %396 = sbr.rel (%p393) target = $region68
      $region67: #{effnet_forward.1} parent=5 // pred_region
        %s397 = ssub.s32 %s21, 1
        %s398 = smul.u32 4, %s31
        %p399 = scmp.lt.s32.totalorder %s30, 1
        %s400 = scalar_select %p399, %s30, 1
        %p401 = scmp.lt.s32.totalorder %s398, 7
        %s402 = scalar_select %p401, %s398, 7
        %s403 = smul.addr %s400, 8
        %s404 = sadd.s32 %s402, %s403
        %s405 = smul.addr %s404, 4
        %s406 = scalar_lea.vmem %s0, %s405
        %p407 = pneg %p61
        %p408 = pneg %p58
        %p409 = scmp.lt.s32.totalorder %s30, 1
        %s410 = scalar_select %p409, %s30, 1
        %s411 = scalar_lea.vmem %s1, %s410
        %p412 = pneg %p87
        %p413 = pneg %p84
        %p414 = pneg %p108
        %p415 = pneg %p105
        %p416 = pneg %p129
        %p417 = pneg %p126
        %p418 = pneg %p150
        %p419 = pneg %p147
        %p420 = pneg %p171
        %p421 = pneg %p168
        %p422 = pneg %p192
        %p423 = pneg %p189
        %p424 = pneg %p213
        %p425 = pneg %p210
        %p426 = pneg %p234
        %p427 = pneg %p231
        %p428 = pneg %p255
        %p429 = pneg %p252
        %p430 = pneg %p276
        %p431 = pneg %p273
        %p432 = pneg %p297
        %p433 = pneg %p294
        %p434 = pneg %p323
        %p435 = pneg %p320
        %s436 = sand.u32 %s310, 1
        %s437 = scalar_lea.sflag [#allocation4], %s436
        %s438 = sand.u32 %s310, 1
        %s439 = scalar_lea.vmem [#allocation3], %s438
        %s440 = smul.u32 4, %s31
        %p441 = scmp.lt.s32.totalorder %s30, 1
        %s442 = scalar_select %p441, %s30, 1
        %p443 = scmp.lt.s32.totalorder %s440, 7
        %s444 = scalar_select %p443, %s440, 7
        %s445 = smul.addr %s442, 8
        %s446 = sadd.s32 %s444, %s445
        %s447 = smul.addr %s446, 4
        %s448 = scalar_lea.vmem %s0, %s447
        %s449 = smul.u32 4, %s31
        %p450 = scmp.lt.s32.totalorder %s30, 1
        %s451 = scalar_select %p450, %s30, 1
        %s452 = scalar_lea.vmem %s1, %s451
        %p454 = scmp.eq.s32.totalorder %s31, 0
        // Predicated region
        $region69: #{effnet_forward.1} parent=67 // pred_check
          %p455 = pneg %p454
        $region70: #{effnet_forward.1} parent=67 // pred_check_branch
          %457 = sbr.rel (%p455) target = $region72
        $region71: #{effnet_forward.1} parent=67 // pred_region
          %458 = vst [vmem:[#allocation2] sm:$0x1] 0.0
        $region72: #{effnet_forward.1} parent=67 // pred_fallthru
          _
        %v459 = vld [vmem:[%s3] sm:$0x3]
        %v460 = vld [vmem:[%s448] sm:$0xf]
        %v461 = vld [vmem:[%s448 + $0x4] sm:$0xf]
        %v462 = vld [vmem:[%s448 + $0x8] sm:$0xf]
        %v463 = vld [vmem:[%s448 + $0xc] sm:$0xf]
        %v464 = vld [vmem:[%s2] sm:$0xf]
        %v465 = vld [vmem:[%s2 + $0x4] sm:$0xf]
        %v466 = vld [vmem:[%s2 + $0x8] sm:$0xf]
        %v467 = vld [vmem:[%s2 + $0xc] sm:$0xf]
        %v472 = vunpack.c.l.b16 %v460
        %v473 = vunpack.c.l.b16 %v461
        %v474 = vunpack.c.l.b16 %v462
        %v475 = vunpack.c.l.b16 %v463
        %v476 = vpack.c.b16 %v473, %v472
        %v477 = vpack.c.b16 %v475, %v474
        %v482 = vunpack.c.l.b16 %v464
        %v483 = vunpack.c.l.b16 %v465
        %v484 = vunpack.c.l.b16 %v466
        %v485 = vunpack.c.l.b16 %v467
        %v486 = vpack.c.b16 %v483, %v482
        %v487 = vpack.c.b16 %v485, %v484
        %vm490 = vcmask 261120
        %v492 = vsel %vm490, %v476, 0
        %v495 = vsel %vm490, %v477, 0
        %497 = vmatpush.bf16.msra.mxu0 0
        %498 = vmatpush.bf16.msra.mxu0 0
        %499 = vmatpush.bf16.msra.mxu0 0
        %500 = vmatpush.bf16.msra.mxu0 0
        %501 = vmatpush.bf16.msra.mxu0 0
        %502 = vmatpush.bf16.msra.mxu0 0
        %503 = vmatpush.bf16.msra.mxu0 %v487
        %504 = vmatpush.bf16.msra.mxu0 %v486
        %505 = vmatmul.bf16.gmra.mxu0 %v492
        %v506 = vpop.f32.mrf.mxu0
        %v507 = vadd.f32 0.0, %v506
        %v508 = vpop.f32.mrf.mxu0
        %v509 = vadd.f32 0.0, %v508
        %510 = vmatmul.bf16.gmra.mxu0 %v495
        %v511 = vpop.f32.mrf.mxu0
        %v512 = vadd.f32 0.0, %v511
        %v513 = vpop.f32.mrf.mxu0
        %v514 = vadd.f32 0.0, %v513
        %515 = vdwg.mxu0
        %v516 = vperm.slane %v459, 0
        %v517 = vmul.f32 %v507, %v516
        %v518 = vmul.f32 %v509, %v516
        %v519 = vmul.f32 %v512, %v516
        %v520 = vmul.f32 %v514, %v516
        %v521 = vperm.slane %v459, 1
        %v522 = vadd.f32 %v517, %v521
        %v523 = vadd.f32 %v518, %v521
        %v524 = vadd.f32 %v519, %v521
        %v525 = vadd.f32 %v520, %v521
        %v526 = vxor.u32 %v522, 2147483648
        %v527 = vxor.u32 %v523, 2147483648
        %v528 = vxor.u32 %v524, 2147483648
        %v529 = vxor.u32 %v525, 2147483648
        %v530 = vmul.f32 %v526, 1.442695
        %v531 = vpow.pop %v530
        %v532 = vmul.f32 %v527, 1.442695
        %v533 = vpow.pop %v532
        %v534 = vmul.f32 %v528, 1.442695
        %v535 = vpow.pop %v534
        %v536 = vmul.f32 %v529, 1.442695
        %v537 = vpow.pop %v536
        %v538 = vadd.f32 %v531, 1.0
        %v539 = vadd.f32 %v533, 1.0
        %v540 = vadd.f32 %v535, 1.0
        %v541 = vadd.f32 %v537, 1.0
        %v542 = vrcp.pop %v538
        %v543 = vmul.f32 %v538, %v542
        %v544 = vsub.f32 1.0, %v543
        %v545 = vmul.f32 %v542, %v544
        %v546 = vadd.f32 %v542, %v545
        %vm547 = vweird.f32 %v538
        %vm548 = vweird.f32 %v542
        %vm549 = vmor %vm547, %vm548
        %v550 = vsel %vm549, %v542, %v546
        %v551 = vand.u32 2147483647, %v538
        %vm552 = vcmp.eq.f32.partialorder %v551, 8.507059e+37
        %v553 = vand.u32 %v538, 2147483648
        %v554 = vor.u32 1.1754944e-38, %v553
        %v555 = vsel %vm552, %v554, %v550
        %v556 = vmul.f32 1.0, %v555
        %v557 = vrcp.pop %v539
        %v558 = vmul.f32 %v539, %v557
        %v559 = vsub.f32 1.0, %v558
        %v560 = vmul.f32 %v557, %v559
        %v561 = vadd.f32 %v557, %v560
        %vm562 = vweird.f32 %v539
        %vm563 = vweird.f32 %v557
        %vm564 = vmor %vm562, %vm563
        %v565 = vsel %vm564, %v557, %v561
        %v566 = vand.u32 2147483647, %v539
        %vm567 = vcmp.eq.f32.partialorder %v566, 8.507059e+37
        %v568 = vand.u32 %v539, 2147483648
        %v569 = vor.u32 1.1754944e-38, %v568
        %v570 = vsel %vm567, %v569, %v565
        %v571 = vmul.f32 1.0, %v570
        %v572 = vrcp.pop %v540
        %v573 = vmul.f32 %v540, %v572
        %v574 = vsub.f32 1.0, %v573
        %v575 = vmul.f32 %v572, %v574
        %v576 = vadd.f32 %v572, %v575
        %vm577 = vweird.f32 %v540
        %vm578 = vweird.f32 %v572
        %vm579 = vmor %vm577, %vm578
        %v580 = vsel %vm579, %v572, %v576
        %v581 = vand.u32 2147483647, %v540
        %vm582 = vcmp.eq.f32.partialorder %v581, 8.507059e+37
        %v583 = vand.u32 %v540, 2147483648
        %v584 = vor.u32 1.1754944e-38, %v583
        %v585 = vsel %vm582, %v584, %v580
        %v586 = vmul.f32 1.0, %v585
        %v587 = vrcp.pop %v541
        %v588 = vmul.f32 %v541, %v587
        %v589 = vsub.f32 1.0, %v588
        %v590 = vmul.f32 %v587, %v589
        %v591 = vadd.f32 %v587, %v590
        %vm592 = vweird.f32 %v541
        %vm593 = vweird.f32 %v587
        %vm594 = vmor %vm592, %vm593
        %v595 = vsel %vm594, %v587, %v591
        %v596 = vand.u32 2147483647, %v541
        %vm597 = vcmp.eq.f32.partialorder %v596, 8.507059e+37
        %v598 = vand.u32 %v541, 2147483648
        %v599 = vor.u32 1.1754944e-38, %v598
        %v600 = vsel %vm597, %v599, %v595
        %v601 = vmul.f32 1.0, %v600
        %v602 = vmul.f32 %v522, %v556
        %v603 = vmul.f32 %v523, %v571
        %v604 = vmul.f32 %v524, %v586
        %v605 = vmul.f32 %v525, %v601
        %v606 = vmax.f32 %v602, 1e-06
        %v607 = vmax.f32 %v603, 1e-06
        %v608 = vmax.f32 %v604, 1e-06
        %v609 = vmax.f32 %v605, 1e-06
        %v610 = vld [vmem:[#allocation2] sm:$0x1]
        %v611 = vmul.f32 %v606, %v606
        %v612 = vmul.f32 %v607, %v607
        %v613 = vmul.f32 %v608, %v608
        %v614 = vmul.f32 %v609, %v609
        %v615 = vmul.f32 %v611, %v606
        %v616 = vmul.f32 %v612, %v607
        %v617 = vmul.f32 %v613, %v608
        %v618 = vmul.f32 %v614, %v609
        %v619 = vadd.f32 %v615, %v616
        %v620 = vadd.f32 %v619, %v617
        %v621 = vadd.f32 %v620, %v618
        %v622 = vrot.slane %v621, 4
        %v623 = vadd.f32 %v621, %v622
        %v624 = vrot.slane %v623, 2
        %v625 = vadd.f32 %v623, %v624
        %v626 = vrot.slane %v625, 1
        %v627 = vadd.f32 %v625, %v626
        %v628 = vadd.f32 %v610, %v627
        %629 = vst [vmem:[#allocation2] sm:$0x1] %v628
        %p630 = scmp.eq.s32.totalorder %s31, 1
        // Predicated region
        $region73: #{effnet_forward.1} parent=67 // pred_check
          %p631 = pneg %p630
        $region74: #{effnet_forward.1} parent=67 // pred_check_branch
          %633 = sbr.rel (%p631) target = $region76
        $region75: #{effnet_forward.1} parent=67 // pred_region
          %v634 = vxor.u32 %v459, 2147483648
          %v635 = vmul.f32 %v634, 1.442695
          %v636 = vpow.pop %v635
          %v637 = vadd.f32 %v636, 1.0
          %v638 = vrcp.pop %v637
          %v639 = vmul.f32 %v637, %v638
          %v640 = vsub.f32 1.0, %v639
          %v641 = vmul.f32 %v638, %v640
          %v642 = vadd.f32 %v638, %v641
          %vm643 = vweird.f32 %v637
          %vm644 = vweird.f32 %v638
          %vm645 = vmor %vm643, %vm644
          %v646 = vsel %vm645, %v638, %v642
          %v647 = vand.u32 2147483647, %v637
          %vm648 = vcmp.eq.f32.partialorder %v647, 8.507059e+37
          %v649 = vand.u32 %v637, 2147483648
          %v650 = vor.u32 1.1754944e-38, %v649
          %v651 = vsel %vm648, %v650, %v646
          %v652 = vmul.f32 1.0, %v651
          %v653 = vmul.f32 %v459, %v652
          %v654 = vmax.f32 %v653, 1e-06
          %v655 = vmul.f32 %v654, %v654
          %v656 = vmul.f32 %v655, %v654
          %v657 = vld [vmem:[#allocation2] sm:$0x1]
          %v658 = vmul.f32 %v656, 0.0
          %660 = vst [vmem:[#allocation1] sm:$0xff] %v658
          %s661 = scalar_lea.vmem [#allocation1], 1
          %v662 = vld [vmem:[%s661] ss:$9 sm:$0xff]
          %v664 = vsub.f32 %v657, %v662
          %v665 = vmul.f32 %v664, 0.015625
          %v666 = vlog2.pop %v665
          %v667 = vmul.f32 %v666, 0.6931472
          %v668 = vmul.f32 %v667, 0.33333334
          %v669 = vmul.f32 %v668, 1.442695
          %v670 = vpow.pop %v669
          %v671 = vld [vmem:[%s9] sm:$0xff]
          %v672 = vld [vmem:[%s9 + $0x8] sm:$0xff]
          %v673 = vld [vmem:[%s9 + $0x10] sm:$0xf]
          %v674 = vld [vmem:[%s10] sm:$0x77]
          %v675 = vld [vmem:[%s4] sm:$0xff]
          %v676 = vld [vmem:[%s4 + $0x8] sm:$0xff]
          %v677 = vld [vmem:[%s4 + $0x10] sm:$0xf]
          %v678 = vld [vmem:[%s4 + $0x14] sm:$0xff]
          %v679 = vld [vmem:[%s4 + $0x1c] sm:$0xff]
          %v680 = vld [vmem:[%s4 + $0x24] sm:$0xf]
          %v681 = vld [vmem:[%s4 + $0x28] sm:$0xff]
          %v682 = vld [vmem:[%s4 + $0x30] sm:$0xff]
          %v683 = vld [vmem:[%s4 + $0x38] sm:$0xf]
          %v684 = vld [vmem:[%s4 + $0x3c] sm:$0xff]
          %v685 = vld [vmem:[%s4 + $0x44] sm:$0xff]
          %v686 = vld [vmem:[%s4 + $0x4c] sm:$0xf]
          %v687 = vld [vmem:[%s4 + $0x50] sm:$0xff]
          %v688 = vld [vmem:[%s4 + $0x58] sm:$0xff]
          %v689 = vld [vmem:[%s4 + $0x60] sm:$0xf]
          %v690 = vld [vmem:[%s4 + $0x64] sm:$0xff]
          %v691 = vld [vmem:[%s4 + $0x6c] sm:$0xff]
          %v692 = vld [vmem:[%s4 + $0x74] sm:$0xf]
          %v693 = vld [vmem:[%s4 + $0x78] sm:$0xff]
          %v694 = vld [vmem:[%s4 + $0x80] sm:$0xff]
          %v695 = vld [vmem:[%s4 + $0x88] sm:$0xf]
          %v696 = vld [vmem:[%s4 + $0x8c] sm:$0xff]
          %v697 = vld [vmem:[%s4 + $0x94] sm:$0xff]
          %v698 = vld [vmem:[%s4 + $0x9c] sm:$0xf]
          %v699 = vld [vmem:[%s4 + $0xa0] sm:$0xff]
          %v700 = vld [vmem:[%s4 + $0xa8] sm:$0xff]
          %v701 = vld [vmem:[%s4 + $0xb0] sm:$0xf]
          %v702 = vld [vmem:[%s4 + $0xb4] sm:$0xff]
          %v703 = vld [vmem:[%s4 + $0xbc] sm:$0xff]
          %v704 = vld [vmem:[%s4 + $0xc4] sm:$0xf]
          %v705 = vld [vmem:[%s4 + $0xc8] sm:$0xff]
          %v706 = vld [vmem:[%s4 + $0xd0] sm:$0xff]
          %v707 = vld [vmem:[%s4 + $0xd8] sm:$0xf]
          %v708 = vld [vmem:[%s4 + $0xdc] sm:$0xff]
          %v709 = vld [vmem:[%s4 + $0xe4] sm:$0xff]
          %v710 = vld [vmem:[%s4 + $0xec] sm:$0xf]
          %v711 = vld [vmem:[%s4 + $0xf0] sm:$0xff]
          %v712 = vld [vmem:[%s4 + $0xf8] sm:$0xff]
          %v713 = vld [vmem:[%s4 + $0x100] sm:$0xf]
          %v714 = vld [vmem:[%s4 + $0x104] sm:$0xff]
          %v715 = vld [vmem:[%s4 + $0x10c] sm:$0xff]
          %v716 = vld [vmem:[%s4 + $0x114] sm:$0xf]
          %v717 = vld [vmem:[%s4 + $0x118] sm:$0xff]
          %v718 = vld [vmem:[%s4 + $0x120] sm:$0xff]
          %v719 = vld [vmem:[%s4 + $0x128] sm:$0xf]
          %v720 = vld [vmem:[%s4 + $0x12c] sm:$0xff]
          %v721 = vld [vmem:[%s4 + $0x134] sm:$0xff]
          %v722 = vld [vmem:[%s4 + $0x13c] sm:$0xf]
          %v771 = vunpack.c.l.b16 %v675
          %v772 = vunpack.c.h.b16 %v675
          %v773 = vunpack.c.l.b16 %v676
          %v774 = vunpack.c.h.b16 %v676
          %v775 = vunpack.c.l.b16 %v677
          %v776 = vunpack.c.l.b16 %v678
          %v777 = vunpack.c.h.b16 %v678
          %v778 = vunpack.c.l.b16 %v679
          %v779 = vunpack.c.h.b16 %v679
          %v780 = vunpack.c.l.b16 %v680
          %v781 = vunpack.c.l.b16 %v681
          %v782 = vunpack.c.h.b16 %v681
          %v783 = vunpack.c.l.b16 %v682
          %v784 = vunpack.c.h.b16 %v682
          %v785 = vunpack.c.l.b16 %v683
          %v786 = vunpack.c.l.b16 %v684
          %v787 = vunpack.c.h.b16 %v684
          %v788 = vunpack.c.l.b16 %v685
          %v789 = vunpack.c.h.b16 %v685
          %v790 = vunpack.c.l.b16 %v686
          %v791 = vunpack.c.l.b16 %v687
          %v792 = vunpack.c.h.b16 %v687
          %v793 = vunpack.c.l.b16 %v688
          %v794 = vunpack.c.h.b16 %v688
          %v795 = vunpack.c.l.b16 %v689
          %v796 = vunpack.c.l.b16 %v690
          %v797 = vunpack.c.h.b16 %v690
          %v798 = vunpack.c.l.b16 %v691
          %v799 = vunpack.c.h.b16 %v691
          %v800 = vunpack.c.l.b16 %v692
          %v801 = vunpack.c.l.b16 %v693
          %v802 = vunpack.c.h.b16 %v693
          %v803 = vunpack.c.l.b16 %v694
          %v804 = vunpack.c.h.b16 %v694
          %v805 = vunpack.c.l.b16 %v695
          %v806 = vunpack.c.l.b16 %v696
          %v807 = vunpack.c.h.b16 %v696
          %v808 = vunpack.c.l.b16 %v697
          %v809 = vunpack.c.h.b16 %v697
          %v810 = vunpack.c.l.b16 %v698
          %v811 = vunpack.c.l.b16 %v699
          %v812 = vunpack.c.h.b16 %v699
          %v813 = vunpack.c.l.b16 %v700
          %v814 = vunpack.c.h.b16 %v700
          %v815 = vunpack.c.l.b16 %v701
          %v816 = vunpack.c.l.b16 %v702
          %v817 = vunpack.c.h.b16 %v702
          %v818 = vunpack.c.l.b16 %v703
          %v819 = vunpack.c.h.b16 %v703
          %v820 = vunpack.c.l.b16 %v704
          %v821 = vunpack.c.l.b16 %v705
          %v822 = vunpack.c.h.b16 %v705
          %v823 = vunpack.c.l.b16 %v706
          %v824 = vunpack.c.h.b16 %v706
          %v825 = vunpack.c.l.b16 %v707
          %v826 = vunpack.c.l.b16 %v708
          %v827 = vunpack.c.h.b16 %v708
          %v828 = vunpack.c.l.b16 %v709
          %v829 = vunpack.c.h.b16 %v709
          %v830 = vunpack.c.l.b16 %v710
          %v831 = vunpack.c.l.b16 %v711
          %v832 = vunpack.c.h.b16 %v711
          %v833 = vunpack.c.l.b16 %v712
          %v834 = vunpack.c.h.b16 %v712
          %v835 = vunpack.c.l.b16 %v713
          %v836 = vunpack.c.l.b16 %v714
          %v837 = vunpack.c.h.b16 %v714
          %v838 = vunpack.c.l.b16 %v715
          %v839 = vunpack.c.h.b16 %v715
          %v840 = vunpack.c.l.b16 %v716
          %v841 = vunpack.c.l.b16 %v717
          %v842 = vunpack.c.h.b16 %v717
          %v843 = vunpack.c.l.b16 %v718
          %v844 = vunpack.c.h.b16 %v718
          %v845 = vunpack.c.l.b16 %v719
          %v846 = vunpack.c.l.b16 %v720
          %v847 = vunpack.c.h.b16 %v720
          %v848 = vunpack.c.l.b16 %v721
          %v849 = vunpack.c.h.b16 %v721
          %v850 = vunpack.c.l.b16 %v722
          %v851 = vpack.c.b16 %v776, %v771
          %v852 = vpack.c.b16 %v777, %v772
          %v853 = vpack.c.b16 %v778, %v773
          %v854 = vpack.c.b16 %v779, %v774
          %v855 = vpack.c.b16 %v780, %v775
          %v856 = vpack.c.b16 %v786, %v781
          %v857 = vpack.c.b16 %v787, %v782
          %v858 = vpack.c.b16 %v788, %v783
          %v859 = vpack.c.b16 %v789, %v784
          %v860 = vpack.c.b16 %v790, %v785
          %v861 = vpack.c.b16 %v796, %v791
          %v862 = vpack.c.b16 %v797, %v792
          %v863 = vpack.c.b16 %v798, %v793
          %v864 = vpack.c.b16 %v799, %v794
          %v865 = vpack.c.b16 %v800, %v795
          %v866 = vpack.c.b16 %v806, %v801
          %v867 = vpack.c.b16 %v807, %v802
          %v868 = vpack.c.b16 %v808, %v803
          %v869 = vpack.c.b16 %v809, %v804
          %v870 = vpack.c.b16 %v810, %v805
          %v871 = vpack.c.b16 %v816, %v811
          %v872 = vpack.c.b16 %v817, %v812
          %v873 = vpack.c.b16 %v818, %v813
          %v874 = vpack.c.b16 %v819, %v814
          %v875 = vpack.c.b16 %v820, %v815
          %v876 = vpack.c.b16 %v826, %v821
          %v877 = vpack.c.b16 %v827, %v822
          %v878 = vpack.c.b16 %v828, %v823
          %v879 = vpack.c.b16 %v829, %v824
          %v880 = vpack.c.b16 %v830, %v825
          %v881 = vpack.c.b16 %v836, %v831
          %v882 = vpack.c.b16 %v837, %v832
          %v883 = vpack.c.b16 %v838, %v833
          %v884 = vpack.c.b16 %v839, %v834
          %v885 = vpack.c.b16 %v840, %v835
          %v886 = vpack.c.b16 %v846, %v841
          %v887 = vpack.c.b16 %v847, %v842
          %v888 = vpack.c.b16 %v848, %v843
          %v889 = vpack.c.b16 %v849, %v844
          %v890 = vpack.c.b16 %v850, %v845
          %v934 = vperm.slane %v671, 0
          %v935 = vperm.slane %v671, 4
          %v936 = vperm.slane %v672, 0
          %v937 = vperm.slane %v672, 4
          %v938 = vperm.slane %v673, 0
          %944 = vmatpush.bf16.msra.mxu0 %v886
          %945 = vmatpush.bf16.msra.mxu0 %v881
          %946 = vmatpush.bf16.msra.mxu0 %v876
          %947 = vmatpush.bf16.msra.mxu0 %v871
          %948 = vmatpush.bf16.msra.mxu0 %v866
          %949 = vmatpush.bf16.msra.mxu0 %v861
          %950 = vmatpush.bf16.msra.mxu0 %v856
          %951 = vmatpush.bf16.msra.mxu0 %v851
          %952 = vmatmul.f32.gmra.mxu0 %v670
          %v953 = vpop.f32.mrf.mxu0
          %v954 = vadd.f32 %v934, %v953
          %955 = vdwg.mxu0
          %956 = vmatpush.bf16.msra.mxu0 %v887
          %957 = vmatpush.bf16.msra.mxu0 %v882
          %958 = vmatpush.bf16.msra.mxu0 %v877
          %959 = vmatpush.bf16.msra.mxu0 %v872
          %960 = vmatpush.bf16.msra.mxu0 %v867
          %961 = vmatpush.bf16.msra.mxu0 %v862
          %962 = vmatpush.bf16.msra.mxu0 %v857
          %963 = vmatpush.bf16.msra.mxu0 %v852
          %964 = vmatmul.f32.gmra.mxu0 %v670
          %v965 = vpop.f32.mrf.mxu0
          %v966 = vadd.f32 %v935, %v965
          %967 = vdwg.mxu0
          %968 = vmatpush.bf16.msra.mxu0 %v888
          %969 = vmatpush.bf16.msra.mxu0 %v883
          %970 = vmatpush.bf16.msra.mxu0 %v878
          %971 = vmatpush.bf16.msra.mxu0 %v873
          %972 = vmatpush.bf16.msra.mxu0 %v868
          %973 = vmatpush.bf16.msra.mxu0 %v863
          %974 = vmatpush.bf16.msra.mxu0 %v858
          %975 = vmatpush.bf16.msra.mxu0 %v853
          %976 = vmatmul.f32.gmra.mxu0 %v670
          %v977 = vpop.f32.mrf.mxu0
          %v978 = vadd.f32 %v936, %v977
          %979 = vdwg.mxu0
          %980 = vmatpush.bf16.msra.mxu0 %v889
          %981 = vmatpush.bf16.msra.mxu0 %v884
          %982 = vmatpush.bf16.msra.mxu0 %v879
          %983 = vmatpush.bf16.msra.mxu0 %v874
          %984 = vmatpush.bf16.msra.mxu0 %v869
          %985 = vmatpush.bf16.msra.mxu0 %v864
          %986 = vmatpush.bf16.msra.mxu0 %v859
          %987 = vmatpush.bf16.msra.mxu0 %v854
          %988 = vmatmul.f32.gmra.mxu0 %v670
          %v989 = vpop.f32.mrf.mxu0
          %v990 = vadd.f32 %v937, %v989
          %991 = vdwg.mxu0
          %992 = vmatpush.bf16.msra.mxu0 %v890
          %993 = vmatpush.bf16.msra.mxu0 %v885
          %994 = vmatpush.bf16.msra.mxu0 %v880
          %995 = vmatpush.bf16.msra.mxu0 %v875
          %996 = vmatpush.bf16.msra.mxu0 %v870
          %997 = vmatpush.bf16.msra.mxu0 %v865
          %998 = vmatpush.bf16.msra.mxu0 %v860
          %999 = vmatpush.bf16.msra.mxu0 %v855
          %1000 = vmatmul.f32.gmra.mxu0 %v670
          %v1001 = vpop.f32.mrf.mxu0
          %v1002 = vadd.f32 %v938, %v1001
          %1003 = vdwg.mxu0
          %v1004 = vld [vmem:[%s452] sm:$0x1]
          %v1005 = vld [vmem:[%s5] sm:$0xff]
          %v1006 = vld [vmem:[%s5 + $0x8] sm:$0xff]
          %v1007 = vld [vmem:[%s5 + $0x10] sm:$0xf]
          %v1008 = vld [vmem:[%s5 + $0x14] sm:$0xff]
          %v1009 = vld [vmem:[%s5 + $0x1c] sm:$0xff]
          %v1010 = vld [vmem:[%s5 + $0x24] sm:$0xf]
          %v1017 = vunpack.c.l.b16 %v1005
          %v1018 = vunpack.c.h.b16 %v1005
          %v1019 = vunpack.c.l.b16 %v1006
          %v1020 = vunpack.c.h.b16 %v1006
          %v1021 = vunpack.c.l.b16 %v1007
          %v1022 = vunpack.c.l.b16 %v1008
          %v1023 = vunpack.c.h.b16 %v1008
          %v1024 = vunpack.c.l.b16 %v1009
          %v1025 = vunpack.c.h.b16 %v1009
          %v1026 = vunpack.c.l.b16 %v1010
          %v1027 = vpack.c.b16 %v1022, %v1017
          %v1028 = vpack.c.b16 %v1023, %v1018
          %v1029 = vpack.c.b16 %v1024, %v1019
          %v1030 = vpack.c.b16 %v1025, %v1020
          %v1031 = vpack.c.b16 %v1026, %v1021
          %v1037 = vperm.slane %v671, 1
          %v1038 = vperm.slane %v671, 5
          %v1039 = vperm.slane %v672, 1
          %v1040 = vperm.slane %v672, 5
          %v1041 = vperm.slane %v673, 1
          %vm1047 = vcmask 130048
          %v1049 = vsel %vm1047, %v1004, 0
          %1051 = vmatpush.bf16.msra.mxu0 0
          %1052 = vmatpush.bf16.msra.mxu0 0
          %1053 = vmatpush.bf16.msra.mxu0 0
          %1054 = vmatpush.bf16.msra.mxu0 0
          %1055 = vmatpush.bf16.msra.mxu0 0
          %1056 = vmatpush.bf16.msra.mxu0 0
          %1057 = vmatpush.bf16.msra.mxu0 0
          %1058 = vmatpush.bf16.msra.mxu0 %v1027
          %1059 = vmatmul.f32.gmra.mxu0 %v1049
          %v1060 = vpop.f32.mrf.mxu0
          %v1061 = vadd.f32 %v1037, %v1060
          %1062 = vdwg.mxu0
          %1063 = vmatpush.bf16.msra.mxu0 0
          %1064 = vmatpush.bf16.msra.mxu0 0
          %1065 = vmatpush.bf16.msra.mxu0 0
          %1066 = vmatpush.bf16.msra.mxu0 0
          %1067 = vmatpush.bf16.msra.mxu0 0
          %1068 = vmatpush.bf16.msra.mxu0 0
          %1069 = vmatpush.bf16.msra.mxu0 0
          %1070 = vmatpush.bf16.msra.mxu0 %v1028
          %1071 = vmatmul.f32.gmra.mxu0 %v1049
          %v1072 = vpop.f32.mrf.mxu0
          %v1073 = vadd.f32 %v1038, %v1072
          %1074 = vdwg.mxu0
          %1075 = vmatpush.bf16.msra.mxu0 0
          %1076 = vmatpush.bf16.msra.mxu0 0
          %1077 = vmatpush.bf16.msra.mxu0 0
          %1078 = vmatpush.bf16.msra.mxu0 0
          %1079 = vmatpush.bf16.msra.mxu0 0
          %1080 = vmatpush.bf16.msra.mxu0 0
          %1081 = vmatpush.bf16.msra.mxu0 0
          %1082 = vmatpush.bf16.msra.mxu0 %v1029
          %1083 = vmatmul.f32.gmra.mxu0 %v1049
          %v1084 = vpop.f32.mrf.mxu0
          %v1085 = vadd.f32 %v1039, %v1084
          %1086 = vdwg.mxu0
          %1087 = vmatpush.bf16.msra.mxu0 0
          %1088 = vmatpush.bf16.msra.mxu0 0
          %1089 = vmatpush.bf16.msra.mxu0 0
          %1090 = vmatpush.bf16.msra.mxu0 0
          %1091 = vmatpush.bf16.msra.mxu0 0
          %1092 = vmatpush.bf16.msra.mxu0 0
          %1093 = vmatpush.bf16.msra.mxu0 0
          %1094 = vmatpush.bf16.msra.mxu0 %v1030
          %1095 = vmatmul.f32.gmra.mxu0 %v1049
          %v1096 = vpop.f32.mrf.mxu0
          %v1097 = vadd.f32 %v1040, %v1096
          %1098 = vdwg.mxu0
          %1099 = vmatpush.bf16.msra.mxu0 0
          %1100 = vmatpush.bf16.msra.mxu0 0
          %1101 = vmatpush.bf16.msra.mxu0 0
          %1102 = vmatpush.bf16.msra.mxu0 0
          %1103 = vmatpush.bf16.msra.mxu0 0
          %1104 = vmatpush.bf16.msra.mxu0 0
          %1105 = vmatpush.bf16.msra.mxu0 0
          %1106 = vmatpush.bf16.msra.mxu0 %v1031
          %1107 = vmatmul.f32.gmra.mxu0 %v1049
          %v1108 = vpop.f32.mrf.mxu0
          %v1109 = vadd.f32 %v1041, %v1108
          %1110 = vdwg.mxu0
          %v1111 = vperm.slane %v671, 2
          %v1112 = vperm.slane %v671, 6
          %v1113 = vperm.slane %v672, 2
          %v1114 = vperm.slane %v672, 6
          %v1115 = vperm.slane %v673, 2
          %v1121 = vmul.f32 %v1061, %v1111
          %v1122 = vmul.f32 %v1073, %v1112
          %v1123 = vmul.f32 %v1085, %v1113
          %v1124 = vmul.f32 %v1097, %v1114
          %v1125 = vmul.f32 %v1109, %v1115
          %v1126 = vperm.slane %v671, 3
          %v1127 = vperm.slane %v671, 7
          %v1128 = vperm.slane %v672, 3
          %v1129 = vperm.slane %v672, 7
          %v1130 = vperm.slane %v673, 3
          %v1136 = vadd.f32 %v1121, %v1126
          %v1137 = vadd.f32 %v1122, %v1127
          %v1138 = vadd.f32 %v1123, %v1128
          %v1139 = vadd.f32 %v1124, %v1129
          %v1140 = vadd.f32 %v1125, %v1130
          %v1141 = vmax.f32 %v1136, 0.0
          %v1142 = vmax.f32 %v1137, 0.0
          %v1143 = vmax.f32 %v1138, 0.0
          %v1144 = vmax.f32 %v1139, 0.0
          %v1145 = vmax.f32 %v1140, 0.0
          %v1146 = vld [vmem:[%s6] sm:$0xff]
          %v1147 = vld [vmem:[%s6 + $0x8] sm:$0xff]
          %v1148 = vld [vmem:[%s6 + $0x10] sm:$0xff]
          %v1149 = vld [vmem:[%s6 + $0x18] sm:$0xff]
          %v1150 = vld [vmem:[%s6 + $0x20] sm:$0xff]
          %v1151 = vld [vmem:[%s6 + $0x28] sm:$0xff]
          %v1152 = vld [vmem:[%s6 + $0x30] sm:$0xff]
          %v1153 = vld [vmem:[%s6 + $0x38] sm:$0xff]
          %v1154 = vld [vmem:[%s6 + $0x40] sm:$0xff]
          %v1155 = vld [vmem:[%s6 + $0x48] sm:$0xff]
          %v1156 = vld [vmem:[%s6 + $0x50] sm:$0xff]
          %v1157 = vld [vmem:[%s6 + $0x58] sm:$0xff]
          %v1158 = vld [vmem:[%s6 + $0x60] sm:$0xff]
          %v1159 = vld [vmem:[%s6 + $0x68] sm:$0xff]
          %v1160 = vld [vmem:[%s6 + $0x70] sm:$0xff]
          %v1161 = vld [vmem:[%s6 + $0x78] sm:$0xff]
          %v1162 = vld [vmem:[%s6 + $0x80] sm:$0xff]
          %v1163 = vld [vmem:[%s6 + $0x88] sm:$0xff]
          %v1164 = vld [vmem:[%s6 + $0x90] sm:$0xff]
          %v1165 = vld [vmem:[%s6 + $0x98] sm:$0xff]
          %v1166 = vld [vmem:[%s6 + $0xa0] sm:$0xff]
          %v1167 = vld [vmem:[%s6 + $0xa8] sm:$0xff]
          %v1168 = vld [vmem:[%s6 + $0xb0] sm:$0xff]
          %v1169 = vld [vmem:[%s6 + $0xb8] sm:$0xff]
          %v1170 = vld [vmem:[%s6 + $0xc0] sm:$0xff]
          %v1171 = vld [vmem:[%s6 + $0xc8] sm:$0xff]
          %v1172 = vld [vmem:[%s6 + $0xd0] sm:$0xff]
          %v1173 = vld [vmem:[%s6 + $0xd8] sm:$0xff]
          %v1174 = vld [vmem:[%s6 + $0xe0] sm:$0xff]
          %v1175 = vld [vmem:[%s6 + $0xe8] sm:$0xff]
          %v1176 = vld [vmem:[%s6 + $0xf0] sm:$0xff]
          %v1177 = vld [vmem:[%s6 + $0xf8] sm:$0xff]
          %v1178 = vld [vmem:[%s6 + $0x100] sm:$0xff]
          %v1179 = vld [vmem:[%s6 + $0x108] sm:$0xff]
          %v1180 = vld [vmem:[%s6 + $0x110] sm:$0xff]
          %v1181 = vld [vmem:[%s6 + $0x118] sm:$0xff]
          %v1182 = vld [vmem:[%s6 + $0x120] sm:$0xff]
          %v1183 = vld [vmem:[%s6 + $0x128] sm:$0xff]
          %v1184 = vld [vmem:[%s6 + $0x130] sm:$0xff]
          %v1185 = vld [vmem:[%s6 + $0x138] sm:$0xff]
          %v1186 = vld [vmem:[%s6 + $0x140] sm:$0xff]
          %v1187 = vld [vmem:[%s6 + $0x148] sm:$0xff]
          %v1188 = vld [vmem:[%s6 + $0x150] sm:$0xff]
          %v1189 = vld [vmem:[%s6 + $0x158] sm:$0xff]
          %v1190 = vld [vmem:[%s6 + $0x160] sm:$0xff]
          %v1191 = vld [vmem:[%s6 + $0x168] sm:$0xff]
          %v1192 = vld [vmem:[%s6 + $0x170] sm:$0xff]
          %v1193 = vld [vmem:[%s6 + $0x178] sm:$0xff]
          %v1194 = vld [vmem:[%s6 + $0x180] sm:$0xff]
          %v1195 = vld [vmem:[%s6 + $0x188] sm:$0xff]
          %v1196 = vld [vmem:[%s6 + $0x190] sm:$0xff]
          %v1197 = vld [vmem:[%s6 + $0x198] sm:$0xff]
          %v1198 = vld [vmem:[%s6 + $0x1a0] sm:$0xff]
          %v1199 = vld [vmem:[%s6 + $0x1a8] sm:$0xff]
          %v1200 = vld [vmem:[%s6 + $0x1b0] sm:$0xff]
          %v1201 = vld [vmem:[%s6 + $0x1b8] sm:$0xff]
          %v1202 = vld [vmem:[%s6 + $0x1c0] sm:$0xff]
          %v1203 = vld [vmem:[%s6 + $0x1c8] sm:$0xff]
          %v1204 = vld [vmem:[%s6 + $0x1d0] sm:$0xff]
          %v1205 = vld [vmem:[%s6 + $0x1d8] sm:$0xff]
          %v1206 = vld [vmem:[%s6 + $0x1e0] sm:$0xff]
          %v1207 = vld [vmem:[%s6 + $0x1e8] sm:$0xff]
          %v1208 = vld [vmem:[%s6 + $0x1f0] sm:$0xff]
          %v1209 = vld [vmem:[%s6 + $0x1f8] sm:$0xff]
          %v1210 = vld [vmem:[%s6 + $0x200] sm:$0xff]
          %v1211 = vld [vmem:[%s6 + $0x208] sm:$0xff]
          %v1212 = vld [vmem:[%s6 + $0x210] sm:$0xff]
          %v1213 = vld [vmem:[%s6 + $0x218] sm:$0xff]
          %v1214 = vld [vmem:[%s6 + $0x220] sm:$0xff]
          %v1215 = vld [vmem:[%s6 + $0x228] sm:$0xff]
          %v1216 = vld [vmem:[%s6 + $0x230] sm:$0xff]
          %v1217 = vld [vmem:[%s6 + $0x238] sm:$0xff]
          %v1218 = vld [vmem:[%s6 + $0x240] sm:$0xff]
          %v1219 = vld [vmem:[%s6 + $0x248] sm:$0xff]
          %v1220 = vld [vmem:[%s6 + $0x250] sm:$0xff]
          %v1221 = vld [vmem:[%s6 + $0x258] sm:$0xff]
          %v1222 = vld [vmem:[%s6 + $0x260] sm:$0xff]
          %v1223 = vld [vmem:[%s6 + $0x268] sm:$0xff]
          %v1224 = vld [vmem:[%s6 + $0x270] sm:$0xff]
          %v1225 = vld [vmem:[%s6 + $0x278] sm:$0xff]
          %v1306 = vunpack.c.l.b16 %v1146
          %v1307 = vunpack.c.h.b16 %v1146
          %v1308 = vunpack.c.l.b16 %v1147
          %v1309 = vunpack.c.h.b16 %v1147
          %v1310 = vunpack.c.l.b16 %v1148
          %v1311 = vunpack.c.h.b16 %v1148
          %v1312 = vunpack.c.l.b16 %v1149
          %v1313 = vunpack.c.h.b16 %v1149
          %v1314 = vunpack.c.l.b16 %v1150
          %v1315 = vunpack.c.h.b16 %v1150
          %v1316 = vunpack.c.l.b16 %v1151
          %v1317 = vunpack.c.h.b16 %v1151
          %v1318 = vunpack.c.l.b16 %v1152
          %v1319 = vunpack.c.h.b16 %v1152
          %v1320 = vunpack.c.l.b16 %v1153
          %v1321 = vunpack.c.h.b16 %v1153
          %v1322 = vunpack.c.l.b16 %v1154
          %v1323 = vunpack.c.h.b16 %v1154
          %v1324 = vunpack.c.l.b16 %v1155
          %v1325 = vunpack.c.h.b16 %v1155
          %v1326 = vunpack.c.l.b16 %v1156
          %v1327 = vunpack.c.h.b16 %v1156
          %v1328 = vunpack.c.l.b16 %v1157
          %v1329 = vunpack.c.h.b16 %v1157
          %v1330 = vunpack.c.l.b16 %v1158
          %v1331 = vunpack.c.h.b16 %v1158
          %v1332 = vunpack.c.l.b16 %v1159
          %v1333 = vunpack.c.h.b16 %v1159
          %v1334 = vunpack.c.l.b16 %v1160
          %v1335 = vunpack.c.h.b16 %v1160
          %v1336 = vunpack.c.l.b16 %v1161
          %v1337 = vunpack.c.h.b16 %v1161
          %v1338 = vunpack.c.l.b16 %v1162
          %v1339 = vunpack.c.h.b16 %v1162
          %v1340 = vunpack.c.l.b16 %v1163
          %v1341 = vunpack.c.h.b16 %v1163
          %v1342 = vunpack.c.l.b16 %v1164
          %v1343 = vunpack.c.h.b16 %v1164
          %v1344 = vunpack.c.l.b16 %v1165
          %v1345 = vunpack.c.h.b16 %v1165
          %v1346 = vunpack.c.l.b16 %v1166
          %v1347 = vunpack.c.h.b16 %v1166
          %v1348 = vunpack.c.l.b16 %v1167
          %v1349 = vunpack.c.h.b16 %v1167
          %v1350 = vunpack.c.l.b16 %v1168
          %v1351 = vunpack.c.h.b16 %v1168
          %v1352 = vunpack.c.l.b16 %v1169
          %v1353 = vunpack.c.h.b16 %v1169
          %v1354 = vunpack.c.l.b16 %v1170
          %v1355 = vunpack.c.h.b16 %v1170
          %v1356 = vunpack.c.l.b16 %v1171
          %v1357 = vunpack.c.h.b16 %v1171
          %v1358 = vunpack.c.l.b16 %v1172
          %v1359 = vunpack.c.h.b16 %v1172
          %v1360 = vunpack.c.l.b16 %v1173
          %v1361 = vunpack.c.h.b16 %v1173
          %v1362 = vunpack.c.l.b16 %v1174
          %v1363 = vunpack.c.h.b16 %v1174
          %v1364 = vunpack.c.l.b16 %v1175
          %v1365 = vunpack.c.h.b16 %v1175
          %v1366 = vunpack.c.l.b16 %v1176
          %v1367 = vunpack.c.h.b16 %v1176
          %v1368 = vunpack.c.l.b16 %v1177
          %v1369 = vunpack.c.h.b16 %v1177
          %v1370 = vunpack.c.l.b16 %v1178
          %v1371 = vunpack.c.h.b16 %v1178
          %v1372 = vunpack.c.l.b16 %v1179
          %v1373 = vunpack.c.h.b16 %v1179
          %v1374 = vunpack.c.l.b16 %v1180
          %v1375 = vunpack.c.h.b16 %v1180
          %v1376 = vunpack.c.l.b16 %v1181
          %v1377 = vunpack.c.h.b16 %v1181
          %v1378 = vunpack.c.l.b16 %v1182
          %v1379 = vunpack.c.h.b16 %v1182
          %v1380 = vunpack.c.l.b16 %v1183
          %v1381 = vunpack.c.h.b16 %v1183
          %v1382 = vunpack.c.l.b16 %v1184
          %v1383 = vunpack.c.h.b16 %v1184
          %v1384 = vunpack.c.l.b16 %v1185
          %v1385 = vunpack.c.h.b16 %v1185
          %v1386 = vunpack.c.l.b16 %v1186
          %v1387 = vunpack.c.h.b16 %v1186
          %v1388 = vunpack.c.l.b16 %v1187
          %v1389 = vunpack.c.h.b16 %v1187
          %v1390 = vunpack.c.l.b16 %v1188
          %v1391 = vunpack.c.h.b16 %v1188
          %v1392 = vunpack.c.l.b16 %v1189
          %v1393 = vunpack.c.h.b16 %v1189
          %v1394 = vunpack.c.l.b16 %v1190
          %v1395 = vunpack.c.h.b16 %v1190
          %v1396 = vunpack.c.l.b16 %v1191
          %v1397 = vunpack.c.h.b16 %v1191
          %v1398 = vunpack.c.l.b16 %v1192
          %v1399 = vunpack.c.h.b16 %v1192
          %v1400 = vunpack.c.l.b16 %v1193
          %v1401 = vunpack.c.h.b16 %v1193
          %v1402 = vunpack.c.l.b16 %v1194
          %v1403 = vunpack.c.h.b16 %v1194
          %v1404 = vunpack.c.l.b16 %v1195
          %v1405 = vunpack.c.h.b16 %v1195
          %v1406 = vunpack.c.l.b16 %v1196
          %v1407 = vunpack.c.h.b16 %v1196
          %v1408 = vunpack.c.l.b16 %v1197
          %v1409 = vunpack.c.h.b16 %v1197
          %v1410 = vunpack.c.l.b16 %v1198
          %v1411 = vunpack.c.h.b16 %v1198
          %v1412 = vunpack.c.l.b16 %v1199
          %v1413 = vunpack.c.h.b16 %v1199
          %v1414 = vunpack.c.l.b16 %v1200
          %v1415 = vunpack.c.h.b16 %v1200
          %v1416 = vunpack.c.l.b16 %v1201
          %v1417 = vunpack.c.h.b16 %v1201
          %v1418 = vunpack.c.l.b16 %v1202
          %v1419 = vunpack.c.h.b16 %v1202
          %v1420 = vunpack.c.l.b16 %v1203
          %v1421 = vunpack.c.h.b16 %v1203
          %v1422 = vunpack.c.l.b16 %v1204
          %v1423 = vunpack.c.h.b16 %v1204
          %v1424 = vunpack.c.l.b16 %v1205
          %v1425 = vunpack.c.h.b16 %v1205
          %v1426 = vunpack.c.l.b16 %v1206
          %v1427 = vunpack.c.h.b16 %v1206
          %v1428 = vunpack.c.l.b16 %v1207
          %v1429 = vunpack.c.h.b16 %v1207
          %v1430 = vunpack.c.l.b16 %v1208
          %v1431 = vunpack.c.h.b16 %v1208
          %v1432 = vunpack.c.l.b16 %v1209
          %v1433 = vunpack.c.h.b16 %v1209
          %v1434 = vunpack.c.l.b16 %v1210
          %v1435 = vunpack.c.h.b16 %v1210
          %v1436 = vunpack.c.l.b16 %v1211
          %v1437 = vunpack.c.h.b16 %v1211
          %v1438 = vunpack.c.l.b16 %v1212
          %v1439 = vunpack.c.h.b16 %v1212
          %v1440 = vunpack.c.l.b16 %v1213
          %v1441 = vunpack.c.h.b16 %v1213
          %v1442 = vunpack.c.l.b16 %v1214
          %v1443 = vunpack.c.h.b16 %v1214
          %v1444 = vunpack.c.l.b16 %v1215
          %v1445 = vunpack.c.h.b16 %v1215
          %v1446 = vunpack.c.l.b16 %v1216
          %v1447 = vunpack.c.h.b16 %v1216
          %v1448 = vunpack.c.l.b16 %v1217
          %v1449 = vunpack.c.h.b16 %v1217
          %v1450 = vunpack.c.l.b16 %v1218
          %v1451 = vunpack.c.h.b16 %v1218
          %v1452 = vunpack.c.l.b16 %v1219
          %v1453 = vunpack.c.h.b16 %v1219
          %v1454 = vunpack.c.l.b16 %v1220
          %v1455 = vunpack.c.h.b16 %v1220
          %v1456 = vunpack.c.l.b16 %v1221
          %v1457 = vunpack.c.h.b16 %v1221
          %v1458 = vunpack.c.l.b16 %v1222
          %v1459 = vunpack.c.h.b16 %v1222
          %v1460 = vunpack.c.l.b16 %v1223
          %v1461 = vunpack.c.h.b16 %v1223
          %v1462 = vunpack.c.l.b16 %v1224
          %v1463 = vunpack.c.h.b16 %v1224
          %v1464 = vunpack.c.l.b16 %v1225
          %v1465 = vunpack.c.h.b16 %v1225
          %v1466 = vpack.c.b16 %v1308, %v1306
          %v1467 = vpack.c.b16 %v1309, %v1307
          %v1468 = vpack.c.b16 %v1312, %v1310
          %v1469 = vpack.c.b16 %v1313, %v1311
          %v1470 = vpack.c.b16 %v1316, %v1314
          %v1471 = vpack.c.b16 %v1317, %v1315
          %v1472 = vpack.c.b16 %v1320, %v1318
          %v1473 = vpack.c.b16 %v1321, %v1319
          %v1474 = vpack.c.b16 %v1324, %v1322
          %v1475 = vpack.c.b16 %v1325, %v1323
          %v1476 = vpack.c.b16 %v1328, %v1326
          %v1477 = vpack.c.b16 %v1329, %v1327
          %v1478 = vpack.c.b16 %v1332, %v1330
          %v1479 = vpack.c.b16 %v1333, %v1331
          %v1480 = vpack.c.b16 %v1336, %v1334
          %v1481 = vpack.c.b16 %v1337, %v1335
          %v1482 = vpack.c.b16 %v1340, %v1338
          %v1483 = vpack.c.b16 %v1341, %v1339
          %v1484 = vpack.c.b16 %v1344, %v1342
          %v1485 = vpack.c.b16 %v1345, %v1343
          %v1486 = vpack.c.b16 %v1348, %v1346
          %v1487 = vpack.c.b16 %v1349, %v1347
          %v1488 = vpack.c.b16 %v1352, %v1350
          %v1489 = vpack.c.b16 %v1353, %v1351
          %v1490 = vpack.c.b16 %v1356, %v1354
          %v1491 = vpack.c.b16 %v1357, %v1355
          %v1492 = vpack.c.b16 %v1360, %v1358
          %v1493 = vpack.c.b16 %v1361, %v1359
          %v1494 = vpack.c.b16 %v1364, %v1362
          %v1495 = vpack.c.b16 %v1365, %v1363
          %v1496 = vpack.c.b16 %v1368, %v1366
          %v1497 = vpack.c.b16 %v1369, %v1367
          %v1498 = vpack.c.b16 %v1372, %v1370
          %v1499 = vpack.c.b16 %v1373, %v1371
          %v1500 = vpack.c.b16 %v1376, %v1374
          %v1501 = vpack.c.b16 %v1377, %v1375
          %v1502 = vpack.c.b16 %v1380, %v1378
          %v1503 = vpack.c.b16 %v1381, %v1379
          %v1504 = vpack.c.b16 %v1384, %v1382
          %v1505 = vpack.c.b16 %v1385, %v1383
          %v1506 = vpack.c.b16 %v1388, %v1386
          %v1507 = vpack.c.b16 %v1389, %v1387
          %v1508 = vpack.c.b16 %v1392, %v1390
          %v1509 = vpack.c.b16 %v1393, %v1391
          %v1510 = vpack.c.b16 %v1396, %v1394
          %v1511 = vpack.c.b16 %v1397, %v1395
          %v1512 = vpack.c.b16 %v1400, %v1398
          %v1513 = vpack.c.b16 %v1401, %v1399
          %v1514 = vpack.c.b16 %v1404, %v1402
          %v1515 = vpack.c.b16 %v1405, %v1403
          %v1516 = vpack.c.b16 %v1408, %v1406
          %v1517 = vpack.c.b16 %v1409, %v1407
          %v1518 = vpack.c.b16 %v1412, %v1410
          %v1519 = vpack.c.b16 %v1413, %v1411
          %v1520 = vpack.c.b16 %v1416, %v1414
          %v1521 = vpack.c.b16 %v1417, %v1415
          %v1522 = vpack.c.b16 %v1420, %v1418
          %v1523 = vpack.c.b16 %v1421, %v1419
          %v1524 = vpack.c.b16 %v1424, %v1422
          %v1525 = vpack.c.b16 %v1425, %v1423
          %v1526 = vpack.c.b16 %v1428, %v1426
          %v1527 = vpack.c.b16 %v1429, %v1427
          %v1528 = vpack.c.b16 %v1432, %v1430
          %v1529 = vpack.c.b16 %v1433, %v1431
          %v1530 = vpack.c.b16 %v1436, %v1434
          %v1531 = vpack.c.b16 %v1437, %v1435
          %v1532 = vpack.c.b16 %v1440, %v1438
          %v1533 = vpack.c.b16 %v1441, %v1439
          %v1534 = vpack.c.b16 %v1444, %v1442
          %v1535 = vpack.c.b16 %v1445, %v1443
          %v1536 = vpack.c.b16 %v1448, %v1446
          %v1537 = vpack.c.b16 %v1449, %v1447
          %v1538 = vpack.c.b16 %v1452, %v1450
          %v1539 = vpack.c.b16 %v1453, %v1451
          %v1540 = vpack.c.b16 %v1456, %v1454
          %v1541 = vpack.c.b16 %v1457, %v1455
          %v1542 = vpack.c.b16 %v1460, %v1458
          %v1543 = vpack.c.b16 %v1461, %v1459
          %v1544 = vpack.c.b16 %v1464, %v1462
          %v1545 = vpack.c.b16 %v1465, %v1463
          %v1627 = vperm.slane %v674, 0
          %v1628 = vperm.slane %v674, 4
          %1631 = vmatpush.bf16.msra.mxu0 %v1480
          %1632 = vmatpush.bf16.msra.mxu0 %v1478
          %1633 = vmatpush.bf16.msra.mxu0 %v1476
          %1634 = vmatpush.bf16.msra.mxu0 %v1474
          %1635 = vmatpush.bf16.msra.mxu0 %v1472
          %1636 = vmatpush.bf16.msra.mxu0 %v1470
          %1637 = vmatpush.bf16.msra.mxu0 %v1468
          %1638 = vmatpush.bf16.msra.mxu0 %v1466
          %1639 = vmatmul.f32.gmra.mxu0 %v1141
          %v1640 = vpop.f32.mrf.mxu0
          %v1641 = vadd.f32 %v1627, %v1640
          %1642 = vdwg.mxu0
          %1643 = vmatpush.bf16.msra.mxu0 %v1496
          %1644 = vmatpush.bf16.msra.mxu0 %v1494
          %1645 = vmatpush.bf16.msra.mxu0 %v1492
          %1646 = vmatpush.bf16.msra.mxu0 %v1490
          %1647 = vmatpush.bf16.msra.mxu0 %v1488
          %1648 = vmatpush.bf16.msra.mxu0 %v1486
          %1649 = vmatpush.bf16.msra.mxu0 %v1484
          %1650 = vmatpush.bf16.msra.mxu0 %v1482
          %1651 = vmatmul.f32.gmra.mxu0 %v1142
          %v1652 = vpop.f32.mrf.mxu0
          %v1653 = vadd.f32 %v1641, %v1652
          %1654 = vdwg.mxu0
          %1655 = vmatpush.bf16.msra.mxu0 %v1512
          %1656 = vmatpush.bf16.msra.mxu0 %v1510
          %1657 = vmatpush.bf16.msra.mxu0 %v1508
          %1658 = vmatpush.bf16.msra.mxu0 %v1506
          %1659 = vmatpush.bf16.msra.mxu0 %v1504
          %1660 = vmatpush.bf16.msra.mxu0 %v1502
          %1661 = vmatpush.bf16.msra.mxu0 %v1500
          %1662 = vmatpush.bf16.msra.mxu0 %v1498
          %1663 = vmatmul.f32.gmra.mxu0 %v1143
          %v1664 = vpop.f32.mrf.mxu0
          %v1665 = vadd.f32 %v1653, %v1664
          %1666 = vdwg.mxu0
          %1667 = vmatpush.bf16.msra.mxu0 %v1528
          %1668 = vmatpush.bf16.msra.mxu0 %v1526
          %1669 = vmatpush.bf16.msra.mxu0 %v1524
          %1670 = vmatpush.bf16.msra.mxu0 %v1522
          %1671 = vmatpush.bf16.msra.mxu0 %v1520
          %1672 = vmatpush.bf16.msra.mxu0 %v1518
          %1673 = vmatpush.bf16.msra.mxu0 %v1516
          %1674 = vmatpush.bf16.msra.mxu0 %v1514
          %1675 = vmatmul.f32.gmra.mxu0 %v1144
          %v1676 = vpop.f32.mrf.mxu0
          %v1677 = vadd.f32 %v1665, %v1676
          %1678 = vdwg.mxu0
          %1679 = vmatpush.bf16.msra.mxu0 %v1544
          %1680 = vmatpush.bf16.msra.mxu0 %v1542
          %1681 = vmatpush.bf16.msra.mxu0 %v1540
          %1682 = vmatpush.bf16.msra.mxu0 %v1538
          %1683 = vmatpush.bf16.msra.mxu0 %v1536
          %1684 = vmatpush.bf16.msra.mxu0 %v1534
          %1685 = vmatpush.bf16.msra.mxu0 %v1532
          %1686 = vmatpush.bf16.msra.mxu0 %v1530
          %1687 = vmatmul.f32.gmra.mxu0 %v1145
          %v1688 = vpop.f32.mrf.mxu0
          %v1689 = vadd.f32 %v1677, %v1688
          %1690 = vdwg.mxu0
          %1691 = vmatpush.bf16.msra.mxu0 %v1481
          %1692 = vmatpush.bf16.msra.mxu0 %v1479
          %1693 = vmatpush.bf16.msra.mxu0 %v1477
          %1694 = vmatpush.bf16.msra.mxu0 %v1475
          %1695 = vmatpush.bf16.msra.mxu0 %v1473
          %1696 = vmatpush.bf16.msra.mxu0 %v1471
          %1697 = vmatpush.bf16.msra.mxu0 %v1469
          %1698 = vmatpush.bf16.msra.mxu0 %v1467
          %1699 = vmatmul.f32.gmra.mxu0 %v1141
          %v1700 = vpop.f32.mrf.mxu0
          %v1701 = vadd.f32 %v1628, %v1700
          %1702 = vdwg.mxu0
          %1703 = vmatpush.bf16.msra.mxu0 %v1497
          %1704 = vmatpush.bf16.msra.mxu0 %v1495
          %1705 = vmatpush.bf16.msra.mxu0 %v1493
          %1706 = vmatpush.bf16.msra.mxu0 %v1491
          %1707 = vmatpush.bf16.msra.mxu0 %v1489
          %1708 = vmatpush.bf16.msra.mxu0 %v1487
          %1709 = vmatpush.bf16.msra.mxu0 %v1485
          %1710 = vmatpush.bf16.msra.mxu0 %v1483
          %1711 = vmatmul.f32.gmra.mxu0 %v1142
          %v1712 = vpop.f32.mrf.mxu0
          %v1713 = vadd.f32 %v1701, %v1712
          %1714 = vdwg.mxu0
          %1715 = vmatpush.bf16.msra.mxu0 %v1513
          %1716 = vmatpush.bf16.msra.mxu0 %v1511
          %1717 = vmatpush.bf16.msra.mxu0 %v1509
          %1718 = vmatpush.bf16.msra.mxu0 %v1507
          %1719 = vmatpush.bf16.msra.mxu0 %v1505
          %1720 = vmatpush.bf16.msra.mxu0 %v1503
          %1721 = vmatpush.bf16.msra.mxu0 %v1501
          %1722 = vmatpush.bf16.msra.mxu0 %v1499
          %1723 = vmatmul.f32.gmra.mxu0 %v1143
          %v1724 = vpop.f32.mrf.mxu0
          %v1725 = vadd.f32 %v1713, %v1724
          %1726 = vdwg.mxu0
          %1727 = vmatpush.bf16.msra.mxu0 %v1529
          %1728 = vmatpush.bf16.msra.mxu0 %v1527
          %1729 = vmatpush.bf16.msra.mxu0 %v1525
          %1730 = vmatpush.bf16.msra.mxu0 %v1523
          %1731 = vmatpush.bf16.msra.mxu0 %v1521
          %1732 = vmatpush.bf16.msra.mxu0 %v1519
          %1733 = vmatpush.bf16.msra.mxu0 %v1517
          %1734 = vmatpush.bf16.msra.mxu0 %v1515
          %1735 = vmatmul.f32.gmra.mxu0 %v1144
          %v1736 = vpop.f32.mrf.mxu0
          %v1737 = vadd.f32 %v1725, %v1736
          %1738 = vdwg.mxu0
          %1739 = vmatpush.bf16.msra.mxu0 %v1545
          %1740 = vmatpush.bf16.msra.mxu0 %v1543
          %1741 = vmatpush.bf16.msra.mxu0 %v1541
          %1742 = vmatpush.bf16.msra.mxu0 %v1539
          %1743 = vmatpush.bf16.msra.mxu0 %v1537
          %1744 = vmatpush.bf16.msra.mxu0 %v1535
          %1745 = vmatpush.bf16.msra.mxu0 %v1533
          %1746 = vmatpush.bf16.msra.mxu0 %v1531
          %1747 = vmatmul.f32.gmra.mxu0 %v1145
          %v1748 = vpop.f32.mrf.mxu0
          %v1749 = vadd.f32 %v1737, %v1748
          %1750 = vdwg.mxu0
          %v1751 = vperm.slane %v674, 1
          %v1752 = vperm.slane %v674, 5
          %v1755 = vmul.f32 %v1689, %v1751
          %v1756 = vmul.f32 %v1749, %v1752
          %v1757 = vperm.slane %v674, 2
          %v1758 = vperm.slane %v674, 6
          %v1761 = vadd.f32 %v1755, %v1757
          %v1762 = vadd.f32 %v1756, %v1758
          %v1763 = vmax.f32 %v1761, 0.0
          %v1764 = vmax.f32 %v1762, 0.0
          %v1765 = vld [vmem:[%s7] sm:$0xf]
          %v1766 = vld [vmem:[%s7 + $0x4] sm:$0xf]
          %v1767 = vld [vmem:[%s7 + $0x8] sm:$0xf]
          %v1768 = vld [vmem:[%s7 + $0xc] sm:$0xf]
          %v1769 = vld [vmem:[%s7 + $0x10] sm:$0xf]
          %v1770 = vld [vmem:[%s7 + $0x14] sm:$0xf]
          %v1771 = vld [vmem:[%s7 + $0x18] sm:$0xf]
          %v1772 = vld [vmem:[%s7 + $0x1c] sm:$0xf]
          %v1773 = vld [vmem:[%s7 + $0x20] sm:$0xf]
          %v1774 = vld [vmem:[%s7 + $0x24] sm:$0xf]
          %v1775 = vld [vmem:[%s7 + $0x28] sm:$0xf]
          %v1776 = vld [vmem:[%s7 + $0x2c] sm:$0xf]
          %v1777 = vld [vmem:[%s7 + $0x30] sm:$0xf]
          %v1778 = vld [vmem:[%s7 + $0x34] sm:$0xf]
          %v1779 = vld [vmem:[%s7 + $0x38] sm:$0xf]
          %v1780 = vld [vmem:[%s7 + $0x3c] sm:$0xf]
          %v1781 = vld [vmem:[%s7 + $0x40] sm:$0xf]
          %v1782 = vld [vmem:[%s7 + $0x44] sm:$0xf]
          %v1783 = vld [vmem:[%s7 + $0x48] sm:$0xf]
          %v1784 = vld [vmem:[%s7 + $0x4c] sm:$0xf]
          %v1785 = vld [vmem:[%s7 + $0x50] sm:$0xf]
          %v1786 = vld [vmem:[%s7 + $0x54] sm:$0xf]
          %v1787 = vld [vmem:[%s7 + $0x58] sm:$0xf]
          %v1788 = vld [vmem:[%s7 + $0x5c] sm:$0xf]
          %v1789 = vld [vmem:[%s7 + $0x60] sm:$0xf]
          %v1790 = vld [vmem:[%s7 + $0x64] sm:$0xf]
          %v1791 = vld [vmem:[%s7 + $0x68] sm:$0xf]
          %v1792 = vld [vmem:[%s7 + $0x6c] sm:$0xf]
          %v1793 = vld [vmem:[%s7 + $0x70] sm:$0xf]
          %v1794 = vld [vmem:[%s7 + $0x74] sm:$0xf]
          %v1795 = vld [vmem:[%s7 + $0x78] sm:$0xf]
          %v1796 = vld [vmem:[%s7 + $0x7c] sm:$0xf]
          %v1797 = vld [vmem:[%s7 + $0x80] sm:$0xf]
          %v1798 = vld [vmem:[%s7 + $0x84] sm:$0xf]
          %v1799 = vld [vmem:[%s7 + $0x88] sm:$0xf]
          %v1800 = vld [vmem:[%s7 + $0x8c] sm:$0xf]
          %v1801 = vld [vmem:[%s7 + $0x90] sm:$0xf]
          %v1802 = vld [vmem:[%s7 + $0x94] sm:$0xf]
          %v1803 = vld [vmem:[%s7 + $0x98] sm:$0xf]
          %v1804 = vld [vmem:[%s7 + $0x9c] sm:$0xf]
          %v1805 = vld [vmem:[%s7 + $0xa0] sm:$0xf]
          %v1806 = vld [vmem:[%s7 + $0xa4] sm:$0xf]
          %v1807 = vld [vmem:[%s7 + $0xa8] sm:$0xf]
          %v1808 = vld [vmem:[%s7 + $0xac] sm:$0xf]
          %v1809 = vld [vmem:[%s7 + $0xb0] sm:$0xf]
          %v1810 = vld [vmem:[%s7 + $0xb4] sm:$0xf]
          %v1811 = vld [vmem:[%s7 + $0xb8] sm:$0xf]
          %v1812 = vld [vmem:[%s7 + $0xbc] sm:$0xf]
          %v1813 = vld [vmem:[%s7 + $0xc0] sm:$0xf]
          %v1814 = vld [vmem:[%s7 + $0xc4] sm:$0xf]
          %v1815 = vld [vmem:[%s7 + $0xc8] sm:$0xf]
          %v1816 = vld [vmem:[%s7 + $0xcc] sm:$0xf]
          %v1817 = vld [vmem:[%s7 + $0xd0] sm:$0xf]
          %v1818 = vld [vmem:[%s7 + $0xd4] sm:$0xf]
          %v1819 = vld [vmem:[%s7 + $0xd8] sm:$0xf]
          %v1820 = vld [vmem:[%s7 + $0xdc] sm:$0xf]
          %v1821 = vld [vmem:[%s7 + $0xe0] sm:$0xf]
          %v1822 = vld [vmem:[%s7 + $0xe4] sm:$0xf]
          %v1823 = vld [vmem:[%s7 + $0xe8] sm:$0xf]
          %v1824 = vld [vmem:[%s7 + $0xec] sm:$0xf]
          %v1825 = vld [vmem:[%s7 + $0xf0] sm:$0xf]
          %v1826 = vld [vmem:[%s7 + $0xf4] sm:$0xf]
          %v1827 = vld [vmem:[%s7 + $0xf8] sm:$0xf]
          %v1828 = vld [vmem:[%s7 + $0xfc] sm:$0xf]
          %v1829 = vld [vmem:[%s7 + $0x100] sm:$0xf]
          %v1830 = vld [vmem:[%s7 + $0x104] sm:$0xf]
          %v1831 = vld [vmem:[%s7 + $0x108] sm:$0xf]
          %v1832 = vld [vmem:[%s7 + $0x10c] sm:$0xf]
          %v1833 = vld [vmem:[%s7 + $0x110] sm:$0xf]
          %v1834 = vld [vmem:[%s7 + $0x114] sm:$0xf]
          %v1835 = vld [vmem:[%s7 + $0x118] sm:$0xf]
          %v1836 = vld [vmem:[%s7 + $0x11c] sm:$0xf]
          %v1837 = vld [vmem:[%s7 + $0x120] sm:$0xf]
          %v1838 = vld [vmem:[%s7 + $0x124] sm:$0xf]
          %v1839 = vld [vmem:[%s7 + $0x128] sm:$0xf]
          %v1840 = vld [vmem:[%s7 + $0x12c] sm:$0xf]
          %v1841 = vld [vmem:[%s7 + $0x130] sm:$0xf]
          %v1842 = vld [vmem:[%s7 + $0x134] sm:$0xf]
          %v1843 = vld [vmem:[%s7 + $0x138] sm:$0xf]
          %v1844 = vld [vmem:[%s7 + $0x13c] sm:$0xf]
          %v1845 = vld [vmem:[%s8] sm:$0xf]
          %v1846 = vld [vmem:[%s8 + $0x4] sm:$0xf]
          %v1847 = vld [vmem:[%s8 + $0x8] sm:$0xf]
          %v1848 = vld [vmem:[%s8 + $0xc] sm:$0xf]
          %v1849 = vld [vmem:[%s8 + $0x10] sm:$0xf]
          %v1850 = vld [vmem:[%s8 + $0x14] sm:$0xf]
          %v1851 = vld [vmem:[%s8 + $0x18] sm:$0xf]
          %v1852 = vld [vmem:[%s8 + $0x1c] sm:$0xf]
          %v1853 = vld [vmem:[%s8 + $0x20] sm:$0xf]
          %v1854 = vld [vmem:[%s8 + $0x24] sm:$0xf]
          %v1855 = vld [vmem:[%s8 + $0x28] sm:$0xf]
          %v1856 = vld [vmem:[%s8 + $0x2c] sm:$0xf]
          %v1857 = vld [vmem:[%s8 + $0x30] sm:$0xf]
          %v1858 = vld [vmem:[%s8 + $0x34] sm:$0xf]
          %v1859 = vld [vmem:[%s8 + $0x38] sm:$0xf]
          %v1860 = vld [vmem:[%s8 + $0x3c] sm:$0xf]
          %v1861 = vld [vmem:[%s8 + $0x40] sm:$0xf]
          %v1862 = vld [vmem:[%s8 + $0x44] sm:$0xf]
          %v1863 = vld [vmem:[%s8 + $0x48] sm:$0xf]
          %v1864 = vld [vmem:[%s8 + $0x4c] sm:$0xf]
          %v1865 = vld [vmem:[%s8 + $0x50] sm:$0xf]
          %v1866 = vld [vmem:[%s8 + $0x54] sm:$0xf]
          %v1867 = vld [vmem:[%s8 + $0x58] sm:$0xf]
          %v1868 = vld [vmem:[%s8 + $0x5c] sm:$0xf]
          %v1869 = vld [vmem:[%s8 + $0x60] sm:$0xf]
          %v1870 = vld [vmem:[%s8 + $0x64] sm:$0xf]
          %v1871 = vld [vmem:[%s8 + $0x68] sm:$0xf]
          %v1872 = vld [vmem:[%s8 + $0x6c] sm:$0xf]
          %v1873 = vld [vmem:[%s8 + $0x70] sm:$0xf]
          %v1874 = vld [vmem:[%s8 + $0x74] sm:$0xf]
          %v1875 = vld [vmem:[%s8 + $0x78] sm:$0xf]
          %v1876 = vld [vmem:[%s8 + $0x7c] sm:$0xf]
          %v1909 = vunpack.c.l.b16 %v1845
          %v1910 = vunpack.c.l.b16 %v1846
          %v1911 = vunpack.c.l.b16 %v1847
          %v1912 = vunpack.c.l.b16 %v1848
          %v1913 = vunpack.c.l.b16 %v1849
          %v1914 = vunpack.c.l.b16 %v1850
          %v1915 = vunpack.c.l.b16 %v1851
          %v1916 = vunpack.c.l.b16 %v1852
          %v1917 = vunpack.c.l.b16 %v1853
          %v1918 = vunpack.c.l.b16 %v1854
          %v1919 = vunpack.c.l.b16 %v1855
          %v1920 = vunpack.c.l.b16 %v1856
          %v1921 = vunpack.c.l.b16 %v1857
          %v1922 = vunpack.c.l.b16 %v1858
          %v1923 = vunpack.c.l.b16 %v1859
          %v1924 = vunpack.c.l.b16 %v1860
          %v1925 = vunpack.c.l.b16 %v1861
          %v1926 = vunpack.c.l.b16 %v1862
          %v1927 = vunpack.c.l.b16 %v1863
          %v1928 = vunpack.c.l.b16 %v1864
          %v1929 = vunpack.c.l.b16 %v1865
          %v1930 = vunpack.c.l.b16 %v1866
          %v1931 = vunpack.c.l.b16 %v1867
          %v1932 = vunpack.c.l.b16 %v1868
          %v1933 = vunpack.c.l.b16 %v1869
          %v1934 = vunpack.c.l.b16 %v1870
          %v1935 = vunpack.c.l.b16 %v1871
          %v1936 = vunpack.c.l.b16 %v1872
          %v1937 = vunpack.c.l.b16 %v1873
          %v1938 = vunpack.c.l.b16 %v1874
          %v1939 = vunpack.c.l.b16 %v1875
          %v1940 = vunpack.c.l.b16 %v1876
          %v1941 = vpack.c.b16 %v1910, %v1909
          %v1942 = vpack.c.b16 %v1912, %v1911
          %v1943 = vpack.c.b16 %v1914, %v1913
          %v1944 = vpack.c.b16 %v1916, %v1915
          %v1945 = vpack.c.b16 %v1918, %v1917
          %v1946 = vpack.c.b16 %v1920, %v1919
          %v1947 = vpack.c.b16 %v1922, %v1921
          %v1948 = vpack.c.b16 %v1924, %v1923
          %v1949 = vpack.c.b16 %v1926, %v1925
          %v1950 = vpack.c.b16 %v1928, %v1927
          %v1951 = vpack.c.b16 %v1930, %v1929
          %v1952 = vpack.c.b16 %v1932, %v1931
          %v1953 = vpack.c.b16 %v1934, %v1933
          %v1954 = vpack.c.b16 %v1936, %v1935
          %v1955 = vpack.c.b16 %v1938, %v1937
          %v1956 = vpack.c.b16 %v1940, %v1939
          %1973 = vmatpush.bf16.msra.mxu0 %v1948
          %1974 = vmatpush.bf16.msra.mxu0 %v1947
          %1975 = vmatpush.bf16.msra.mxu0 %v1946
          %1976 = vmatpush.bf16.msra.mxu0 %v1945
          %1977 = vmatpush.bf16.msra.mxu0 %v1944
          %1978 = vmatpush.bf16.msra.mxu0 %v1943
          %1979 = vmatpush.bf16.msra.mxu0 %v1942
          %1980 = vmatpush.bf16.msra.mxu0 %v1941
          %1981 = vmatmul.f32.gmra.mxu0 %v1763
          %v1982 = vpop.f32.mrf.mxu0
          %v1983 = vadd.f32 0.0, %v1982
          %1984 = vdwg.mxu0
          %1985 = vmatpush.bf16.msra.mxu0 %v1956
          %1986 = vmatpush.bf16.msra.mxu0 %v1955
          %1987 = vmatpush.bf16.msra.mxu0 %v1954
          %1988 = vmatpush.bf16.msra.mxu0 %v1953
          %1989 = vmatpush.bf16.msra.mxu0 %v1952
          %1990 = vmatpush.bf16.msra.mxu0 %v1951
          %1991 = vmatpush.bf16.msra.mxu0 %v1950
          %1992 = vmatpush.bf16.msra.mxu0 %v1949
          %1993 = vmatmul.f32.gmra.mxu0 %v1764
          %v1994 = vpop.f32.mrf.mxu0
          %v1995 = vadd.f32 %v1983, %v1994
          %1996 = vdwg.mxu0
          %v2077 = vunpack.c.l.b16 %v1765
          %v2078 = vunpack.c.l.b16 %v1766
          %v2079 = vunpack.c.l.b16 %v1767
          %v2080 = vunpack.c.l.b16 %v1768
          %v2081 = vunpack.c.l.b16 %v1769
          %v2082 = vunpack.c.l.b16 %v1770
          %v2083 = vunpack.c.l.b16 %v1771
          %v2084 = vunpack.c.l.b16 %v1772
          %v2085 = vunpack.c.l.b16 %v1773
          %v2086 = vunpack.c.l.b16 %v1774
          %v2087 = vunpack.c.l.b16 %v1775
          %v2088 = vunpack.c.l.b16 %v1776
          %v2089 = vunpack.c.l.b16 %v1777
          %v2090 = vunpack.c.l.b16 %v1778
          %v2091 = vunpack.c.l.b16 %v1779
          %v2092 = vunpack.c.l.b16 %v1780
          %v2093 = vunpack.c.l.b16 %v1781
          %v2094 = vunpack.c.l.b16 %v1782
          %v2095 = vunpack.c.l.b16 %v1783
          %v2096 = vunpack.c.l.b16 %v1784
          %v2097 = vunpack.c.l.b16 %v1785
          %v2098 = vunpack.c.l.b16 %v1786
          %v2099 = vunpack.c.l.b16 %v1787
          %v2100 = vunpack.c.l.b16 %v1788
          %v2101 = vunpack.c.l.b16 %v1789
          %v2102 = vunpack.c.l.b16 %v1790
          %v2103 = vunpack.c.l.b16 %v1791
          %v2104 = vunpack.c.l.b16 %v1792
          %v2105 = vunpack.c.l.b16 %v1793
          %v2106 = vunpack.c.l.b16 %v1794
          %v2107 = vunpack.c.l.b16 %v1795
          %v2108 = vunpack.c.l.b16 %v1796
          %v2109 = vunpack.c.l.b16 %v1797
          %v2110 = vunpack.c.l.b16 %v1798
          %v2111 = vunpack.c.l.b16 %v1799
          %v2112 = vunpack.c.l.b16 %v1800
          %v2113 = vunpack.c.l.b16 %v1801
          %v2114 = vunpack.c.l.b16 %v1802
          %v2115 = vunpack.c.l.b16 %v1803
          %v2116 = vunpack.c.l.b16 %v1804
          %v2117 = vunpack.c.l.b16 %v1805
          %v2118 = vunpack.c.l.b16 %v1806
          %v2119 = vunpack.c.l.b16 %v1807
          %v2120 = vunpack.c.l.b16 %v1808
          %v2121 = vunpack.c.l.b16 %v1809
          %v2122 = vunpack.c.l.b16 %v1810
          %v2123 = vunpack.c.l.b16 %v1811
          %v2124 = vunpack.c.l.b16 %v1812
          %v2125 = vunpack.c.l.b16 %v1813
          %v2126 = vunpack.c.l.b16 %v1814
          %v2127 = vunpack.c.l.b16 %v1815
          %v2128 = vunpack.c.l.b16 %v1816
          %v2129 = vunpack.c.l.b16 %v1817
          %v2130 = vunpack.c.l.b16 %v1818
          %v2131 = vunpack.c.l.b16 %v1819
          %v2132 = vunpack.c.l.b16 %v1820
          %v2133 = vunpack.c.l.b16 %v1821
          %v2134 = vunpack.c.l.b16 %v1822
          %v2135 = vunpack.c.l.b16 %v1823
          %v2136 = vunpack.c.l.b16 %v1824
          %v2137 = vunpack.c.l.b16 %v1825
          %v2138 = vunpack.c.l.b16 %v1826
          %v2139 = vunpack.c.l.b16 %v1827
          %v2140 = vunpack.c.l.b16 %v1828
          %v2141 = vunpack.c.l.b16 %v1829
          %v2142 = vunpack.c.l.b16 %v1830
          %v2143 = vunpack.c.l.b16 %v1831
          %v2144 = vunpack.c.l.b16 %v1832
          %v2145 = vunpack.c.l.b16 %v1833
          %v2146 = vunpack.c.l.b16 %v1834
          %v2147 = vunpack.c.l.b16 %v1835
          %v2148 = vunpack.c.l.b16 %v1836
          %v2149 = vunpack.c.l.b16 %v1837
          %v2150 = vunpack.c.l.b16 %v1838
          %v2151 = vunpack.c.l.b16 %v1839
          %v2152 = vunpack.c.l.b16 %v1840
          %v2153 = vunpack.c.l.b16 %v1841
          %v2154 = vunpack.c.l.b16 %v1842
          %v2155 = vunpack.c.l.b16 %v1843
          %v2156 = vunpack.c.l.b16 %v1844
          %v2157 = vpack.c.b16 %v2078, %v2077
          %v2158 = vpack.c.b16 %v2080, %v2079
          %v2159 = vpack.c.b16 %v2082, %v2081
          %v2160 = vpack.c.b16 %v2084, %v2083
          %v2161 = vpack.c.b16 %v2086, %v2085
          %v2162 = vpack.c.b16 %v2088, %v2087
          %v2163 = vpack.c.b16 %v2090, %v2089
          %v2164 = vpack.c.b16 %v2092, %v2091
          %v2165 = vpack.c.b16 %v2094, %v2093
          %v2166 = vpack.c.b16 %v2096, %v2095
          %v2167 = vpack.c.b16 %v2098, %v2097
          %v2168 = vpack.c.b16 %v2100, %v2099
          %v2169 = vpack.c.b16 %v2102, %v2101
          %v2170 = vpack.c.b16 %v2104, %v2103
          %v2171 = vpack.c.b16 %v2106, %v2105
          %v2172 = vpack.c.b16 %v2108, %v2107
          %v2173 = vpack.c.b16 %v2110, %v2109
          %v2174 = vpack.c.b16 %v2112, %v2111
          %v2175 = vpack.c.b16 %v2114, %v2113
          %v2176 = vpack.c.b16 %v2116, %v2115
          %v2177 = vpack.c.b16 %v2118, %v2117
          %v2178 = vpack.c.b16 %v2120, %v2119
          %v2179 = vpack.c.b16 %v2122, %v2121
          %v2180 = vpack.c.b16 %v2124, %v2123
          %v2181 = vpack.c.b16 %v2126, %v2125
          %v2182 = vpack.c.b16 %v2128, %v2127
          %v2183 = vpack.c.b16 %v2130, %v2129
          %v2184 = vpack.c.b16 %v2132, %v2131
          %v2185 = vpack.c.b16 %v2134, %v2133
          %v2186 = vpack.c.b16 %v2136, %v2135
          %v2187 = vpack.c.b16 %v2138, %v2137
          %v2188 = vpack.c.b16 %v2140, %v2139
          %v2189 = vpack.c.b16 %v2142, %v2141
          %v2190 = vpack.c.b16 %v2144, %v2143
          %v2191 = vpack.c.b16 %v2146, %v2145
          %v2192 = vpack.c.b16 %v2148, %v2147
          %v2193 = vpack.c.b16 %v2150, %v2149
          %v2194 = vpack.c.b16 %v2152, %v2151
          %v2195 = vpack.c.b16 %v2154, %v2153
          %v2196 = vpack.c.b16 %v2156, %v2155
          %2237 = vmatpush.bf16.msra.mxu0 %v2164
          %2238 = vmatpush.bf16.msra.mxu0 %v2163
          %2239 = vmatpush.bf16.msra.mxu0 %v2162
          %2240 = vmatpush.bf16.msra.mxu0 %v2161
          %2241 = vmatpush.bf16.msra.mxu0 %v2160
          %2242 = vmatpush.bf16.msra.mxu0 %v2159
          %2243 = vmatpush.bf16.msra.mxu0 %v2158
          %2244 = vmatpush.bf16.msra.mxu0 %v2157
          %2245 = vmatmul.f32.gmra.mxu0 %v954
          %v2246 = vpop.f32.mrf.mxu0
          %v2247 = vadd.f32 %v1995, %v2246
          %2248 = vdwg.mxu0
          %2249 = vmatpush.bf16.msra.mxu0 %v2172
          %2250 = vmatpush.bf16.msra.mxu0 %v2171
          %2251 = vmatpush.bf16.msra.mxu0 %v2170
          %2252 = vmatpush.bf16.msra.mxu0 %v2169
          %2253 = vmatpush.bf16.msra.mxu0 %v2168
          %2254 = vmatpush.bf16.msra.mxu0 %v2167
          %2255 = vmatpush.bf16.msra.mxu0 %v2166
          %2256 = vmatpush.bf16.msra.mxu0 %v2165
          %2257 = vmatmul.f32.gmra.mxu0 %v966
          %v2258 = vpop.f32.mrf.mxu0
          %v2259 = vadd.f32 %v2247, %v2258
          %2260 = vdwg.mxu0
          %2261 = vmatpush.bf16.msra.mxu0 %v2180
          %2262 = vmatpush.bf16.msra.mxu0 %v2179
          %2263 = vmatpush.bf16.msra.mxu0 %v2178
          %2264 = vmatpush.bf16.msra.mxu0 %v2177
          %2265 = vmatpush.bf16.msra.mxu0 %v2176
          %2266 = vmatpush.bf16.msra.mxu0 %v2175
          %2267 = vmatpush.bf16.msra.mxu0 %v2174
          %2268 = vmatpush.bf16.msra.mxu0 %v2173
          %2269 = vmatmul.f32.gmra.mxu0 %v978
          %v2270 = vpop.f32.mrf.mxu0
          %v2271 = vadd.f32 %v2259, %v2270
          %2272 = vdwg.mxu0
          %2273 = vmatpush.bf16.msra.mxu0 %v2188
          %2274 = vmatpush.bf16.msra.mxu0 %v2187
          %2275 = vmatpush.bf16.msra.mxu0 %v2186
          %2276 = vmatpush.bf16.msra.mxu0 %v2185
          %2277 = vmatpush.bf16.msra.mxu0 %v2184
          %2278 = vmatpush.bf16.msra.mxu0 %v2183
          %2279 = vmatpush.bf16.msra.mxu0 %v2182
          %2280 = vmatpush.bf16.msra.mxu0 %v2181
          %2281 = vmatmul.f32.gmra.mxu0 %v990
          %v2282 = vpop.f32.mrf.mxu0
          %v2283 = vadd.f32 %v2271, %v2282
          %2284 = vdwg.mxu0
          %2285 = vmatpush.bf16.msra.mxu0 %v2196
          %2286 = vmatpush.bf16.msra.mxu0 %v2195
          %2287 = vmatpush.bf16.msra.mxu0 %v2194
          %2288 = vmatpush.bf16.msra.mxu0 %v2193
          %2289 = vmatpush.bf16.msra.mxu0 %v2192
          %2290 = vmatpush.bf16.msra.mxu0 %v2191
          %2291 = vmatpush.bf16.msra.mxu0 %v2190
          %2292 = vmatpush.bf16.msra.mxu0 %v2189
          %2293 = vmatmul.f32.gmra.mxu0 %v1002
          %v2294 = vpop.f32.mrf.mxu0
          %v2295 = vadd.f32 %v2283, %v2294
          %2296 = vdwg.mxu0
          %v2297 = vld [vmem:[%s11] sm:$0x1]
          %v2298 = vadd.f32 %v2295, %v2297
          %2299 = vst [vmem:[%s439] sm:$0x1] %v2298
        $region76: #{effnet_forward.1} parent=67 // pred_fallthru
          _
        %s2300 = sand.u32 %s310, 1
        %s2301 = scalar_lea.sflag [#allocation4], %s2300
        %s2302 = sand.u32 %s310, 1
        %s2303 = scalar_lea.vmem [#allocation3], %s2302
        // Predicated region
        $region77: #{effnet_forward.1} parent=67 // pred_check
          %p2304 = pneg %p320
        $region78: #{effnet_forward.1} parent=67 // pred_check_branch
          %2306 = sbr.rel (%p2304) target = $region80
        $region79: #{effnet_forward.1} parent=67 // pred_region
          %2308 = vsyncadd %s2301, 0
          %s2309 = scalar_lea.hbm %s12, %s30
          %s2311 = sshll.u32 %s2303, 4
          %s2312 = int_to_ptr.vmem [resolvable:$true] %s2311
          %s2313 = sshll.u32 %s2309, 4
          %s2314 = int_to_ptr.hbm [resolvable:$true] %s2313
          %2316 = dma.vmem_to_hbm [thread:$0]  %s2312, 16, %s2314, %s2301
        $region80: #{effnet_forward.1} parent=67 // pred_fallthru
          _
      $region68: #{effnet_forward.1} parent=5 // pred_fallthru
        _
      %p2317 = scmp.le.s32.totalorder 2, %s21
      // Predicated region
      $region81: #{effnet_forward.1} parent=5 // pred_check
        %p2318 = pneg %p2317
      $region82: #{effnet_forward.1} parent=5 // pred_check_branch
        %2320 = sbr.rel (%p2318) target = $region84
      $region83: #{effnet_forward.1} parent=5 // pred_region
        %s2321 = ssub.s32 %s21, 2
        // Predicated region
        $region85: #{effnet_forward.1} parent=83 // pred_check
          %p2322 = pneg %p326
        $region86: #{effnet_forward.1} parent=83 // pred_check_branch
          %2324 = sbr.rel (%p2322) target = $region88
        $region87: #{effnet_forward.1} parent=83 // pred_region
          %s2325 = sand.u32 %s311, 1
          %s2326 = scalar_lea.sflag [#allocation4], %s2325
          %s2327 = sand.u32 %s311, 1
          %s2328 = scalar_lea.vmem [#allocation3], %s2327
          %2330 = dma.done %s2326, 16
        $region88: #{effnet_forward.1} parent=83 // pred_fallthru
          _
      $region84: #{effnet_forward.1} parent=5 // pred_fallthru
        _
    $region6: #{effnet_forward.1} parent=1 // loop_footer
      %s25 = sadd.s32 1, %s21
    $region7: #{effnet_forward.1} parent=1 // loop_footer_branch
      %20 = sbr.rel target = $region3
    $region8: #{effnet_forward.1} parent=1 // loop_exit
      _
    %2331 = vsyncpa [#allocation4], 1
    %s2332 = scalar_lea.sflag [#allocation4], 1
    %2333 = vsyncpa %s2332, 1

</llo_original>
